<compile_context>
chip_gen: v7x
topology: tpu7x:2x2x1
jax: 0.10.0
libtpu: 0.0.40
codegen_flags: <defaults>
</compile_context>

<pallas_src>
import functools
import math

import jax
import jax.numpy as jnp
from jax.experimental import pallas as pl
from jax.experimental.pallas import tpu as pltpu

LANE = 128       # TPU lane width; final layer padded to a multiple of this.
SUBLANE_BF16 = 16  # bf16 sublane packing granularity.


def _round_up(x, m):
    return ((x + m - 1) // m) * m


def _tpu_kind():
    try:
        return jax.devices()[0].device_kind.lower()
    except Exception:
        return ""


def _use_bf16_epilogue():
    """bf16 bias+ReLU epilogue only where the VPU has native bf16 (v6e/v7x)."""
    kind = _tpu_kind()
    if "tpu" not in kind:
        return False
    return not any(v in kind for v in ("v2", "v3", "v4", "v5"))


def _is_dual_tensorcore():
    """v7x-style chips with 2 TensorCores sharing the 'parallel' grid axis."""
    return "7" in _tpu_kind()


def _choose_tiling(batch, tile_m_max, force_min_grid):
    """Adaptive batch tile: bounds pad waste to <16 rows/tile, dilutes the
    ~0.35 us per-grid-step overhead, and (optionally) keeps >=2 grid steps."""
    batch_r = _round_up(max(batch, 1), SUBLANE_BF16)
    grid_m = max(pl.cdiv(batch_r, tile_m_max), force_min_grid)
    tile_m = _round_up(pl.cdiv(batch_r, grid_m), SUBLANE_BF16)
    grid_m = pl.cdiv(batch_r, tile_m)
    batch_pad = tile_m * grid_m
    return tile_m, grid_m, batch_pad


def _dqn_larger_kernel(x_ref,
                       w1_ref, b1_ref,
                       w2_ref, b2_ref,
                       w3_ref, b3_ref,
                       w4_ref, b4_ref,
                       w5_ref, b5_ref,
                       o_ref, *, bf16_epilogue):
    """Fused forward for one batch tile.

    x_ref:  [TILE_M, n_obs_pad]    bf16
    wi_ref: [in, out]              bf16 (VMEM-resident across grid steps)
    bi_ref: [1, out]               bf16 (v6e/v7x) or f32 (v5e) for layers 1-4;
                                   f32 for layer 5
    o_ref:  [TILE_M, out_padded]   f32 (lane-dense, 128-wide slab)
    """

    def dense_relu(h, w_ref, b_ref):
        y = jnp.dot(h, w_ref[...], preferred_element_type=jnp.float32)
        if bf16_epilogue:
            # bf16 VPU: add + max at 2x per-vreg rate, no separate cast op.
            return jnp.maximum(y.astype(jnp.bfloat16) + b_ref[...], 0.0)
        # f32 epilogue (v5e: no bf16 VPU), then pack to bf16 for next matmul.
        return jnp.maximum(y + b_ref[...], 0.0).astype(jnp.bfloat16)

    h = dense_relu(x_ref[...], w1_ref, b1_ref)
    h = dense_relu(h, w2_ref, b2_ref)
    h = dense_relu(h, w3_ref, b3_ref)
    h = dense_relu(h, w4_ref, b4_ref)
    o_ref[...] = (jnp.dot(h, w5_ref[...], preferred_element_type=jnp.float32)
                  + b5_ref[...])


def dqn_larger_forward(x, kparams, n_actions, tile_m_max=1024):
    """Run the fused DQNLarger forward.

    x:        [batch, n_observations] (any float dtype; cast to bf16)
    kparams:  kernel-format params from prep_kernel_params()
    returns:  [batch, n_actions] float32
    """
    w1, b1, w2, b2, w3, b3, w4, b4, w5p, b5p = kparams
    bf16_epilogue = (b1.dtype == jnp.bfloat16)

    batch, n_obs = x.shape
    n_obs_pad = w1.shape[0]
    hidden = w2.shape[0]
    n_out_pad = w5p.shape[1]

    # >=2 grid steps on dual-TC chips once each tile can still fill the MXU.
    force_min_grid = 2 if (_is_dual_tensorcore()
                           and _round_up(batch, SUBLANE_BF16) >= 256) else 1
    tile_m, grid_m, batch_pad = _choose_tiling(batch, tile_m_max, force_min_grid)

    x_bf = x.astype(jnp.bfloat16)
    pad_rows = batch_pad - batch
    pad_cols = n_obs_pad - n_obs
    if pad_rows or pad_cols:
        x_bf = jnp.pad(x_bf, ((0, pad_rows), (0, pad_cols)))

    const = lambda i: (0, 0)  # weights/biases: same block each step -> resident
    in_specs = [pl.BlockSpec((tile_m, n_obs_pad), lambda i: (i, 0))]
    in_specs += [pl.BlockSpec(p.shape, const)
                 for p in (w1, b1, w2, b2, w3, b3, w4, b4, w5p, b5p)]
    out_specs = pl.BlockSpec((tile_m, n_out_pad), lambda i: (i, 0))
    out_shape = jax.ShapeDtypeStruct((batch_pad, n_out_pad), jnp.float32)

    flops = 2 * batch_pad * (n_obs_pad * hidden + 3 * hidden * hidden
                             + hidden * n_out_pad)
    bytes_accessed = (sum(int(p.size) * p.dtype.itemsize for p in kparams)
                      + int(x_bf.size) * 2
                      + batch_pad * n_out_pad * 4)

    kernel = functools.partial(_dqn_larger_kernel, bf16_epilogue=bf16_epilogue)

    out = pl.pallas_call(
        kernel,
        out_shape=out_shape,
        grid=(grid_m,),
        in_specs=in_specs,
        out_specs=out_specs,
        compiler_params=pltpu.CompilerParams(
            dimension_semantics=("parallel",),
            vmem_limit_bytes=32 * 1024 * 1024),
        cost_estimate=pl.CostEstimate(
            flops=flops, transcendentals=0, bytes_accessed=bytes_accessed),
    )(x_bf, w1, b1, w2, b2, w3, b3, w4, b4, w5p, b5p)

    # TODO(synk): optional actor-path variant that fuses argmax over the padded
    # Q slab inside the kernel and emits int32 actions (skips f32 writeback).
    return out[:batch, :n_actions]


def init_dqn_larger_params(key, n_observations, n_actions, hidden=512):
    """Deterministic f32 init matching PyTorch nn.Linear default:
    W, b ~ U(-1/sqrt(fan_in), 1/sqrt(fan_in)). Weights stored [in, out]."""
    dims = [(n_observations, hidden),
            (hidden, hidden),
            (hidden, hidden),
            (hidden, hidden),
            (hidden, n_actions)]
    params = []
    for fan_in, fan_out in dims:
        key, kw, kb = jax.random.split(key, 3)
        bound = 1.0 / math.sqrt(fan_in)
        w = jax.random.uniform(kw, (fan_in, fan_out), jnp.float32, -bound, bound)
        b = jax.random.uniform(kb, (1, fan_out), jnp.float32, -bound, bound)
        params += [w, b]
    return tuple(params)


def prep_kernel_params(params_f32, bf16_epilogue):
    """Convert f32 master params to kernel format:
      * weights -> bf16, stored [in, out]
      * w1 rows zero-padded so K (= n_observations) is a multiple of 16
      * biases 1-4 bf16 when bf16_epilogue else f32; bias 5 stays f32
      * layer-5 W/b zero-padded to LANE output columns (lane-dense store)."""
    w1, b1, w2, b2, w3, b3, w4, b4, w5, b5 = params_f32

    n_obs = w1.shape[0]
    n_obs_pad = _round_up(max(n_obs, 1), SUBLANE_BF16)
    w1p = jnp.pad(w1, ((0, n_obs_pad - n_obs), (0, 0)))

    n_actions = w5.shape[1]
    n_out_pad = _round_up(max(n_actions, 1), LANE)
    pad = n_out_pad - n_actions
    w5p = jnp.pad(w5, ((0, 0), (0, pad)))
    b5p = jnp.pad(b5, ((0, 0), (0, pad)))

    bias_dtype = jnp.bfloat16 if bf16_epilogue else jnp.float32
    return (w1p.astype(jnp.bfloat16), b1.astype(bias_dtype),
            w2.astype(jnp.bfloat16), b2.astype(bias_dtype),
            w3.astype(jnp.bfloat16), b3.astype(bias_dtype),
            w4.astype(jnp.bfloat16), b4.astype(bias_dtype),
            w5p.astype(jnp.bfloat16), b5p.astype(jnp.float32))


def dqn_larger_reference(x, kparams, n_actions):
    """Plain-JAX reference with matching precision (bf16 operands, f32 accum,
    epilogue dtype inferred from the bias dtype)."""
    w1, b1, w2, b2, w3, b3, w4, b4, w5p, b5p = kparams
    bf16_epilogue = (b1.dtype == jnp.bfloat16)
    n_obs_pad = w1.shape[0]
    h = x.astype(jnp.bfloat16)
    h = jnp.pad(h, ((0, 0), (0, n_obs_pad - h.shape[1])))
    for w, b in ((w1, b1), (w2, b2), (w3, b3), (w4, b4)):
        y = jnp.dot(h, w, preferred_element_type=jnp.float32)
        if bf16_epilogue:
            h = jnp.maximum(y.astype(jnp.bfloat16) + b, 0.0)
        else:
            h = jnp.maximum(y + b, 0.0).astype(jnp.bfloat16)
    out = jnp.dot(h, w5p, preferred_element_type=jnp.float32) + b5p
    return out[:, :n_actions]


if __name__ == "__main__":
    # Small shapes consistent with a gym DQN (e.g. Qube env):
    # n_observations=4 state dims, n_actions=3 discrete actions.
    batch = 2
    n_observations = 4
    n_actions = 3

    key = jax.random.PRNGKey(0)
    key, kx = jax.random.split(key)
    x = jax.random.normal(kx, (batch, n_observations), jnp.float32)

    params_f32 = init_dqn_larger_params(key, n_observations, n_actions)
    bf16_epi = _use_bf16_epilogue()
    kparams = prep_kernel_params(params_f32, bf16_epilogue=bf16_epi)

    out = dqn_larger_forward(x, kparams, n_actions)
    out = jax.block_until_ready(out)

    ref = dqn_larger_reference(x, kparams, n_actions)
    assert out.shape == (batch, n_actions), out.shape
    assert jnp.allclose(out, ref, atol=1e-2, rtol=1e-2), (out, ref)

    print("KERNEL_OK")
</pallas_src>

<mosaic_0001>
module attributes {stable_mosaic.version = 11 : i64} {
  func.func @_dqn_larger_kernel(%arg0: i32, %arg1: memref<16x16xbf16, #tpu.memory_space<vmem>>, %arg2: memref<16x512xbf16, #tpu.memory_space<vmem>>, %arg3: memref<1x512xf32, #tpu.memory_space<vmem>>, %arg4: memref<512x512xbf16, #tpu.memory_space<vmem>>, %arg5: memref<1x512xf32, #tpu.memory_space<vmem>>, %arg6: memref<512x512xbf16, #tpu.memory_space<vmem>>, %arg7: memref<1x512xf32, #tpu.memory_space<vmem>>, %arg8: memref<512x512xbf16, #tpu.memory_space<vmem>>, %arg9: memref<1x512xf32, #tpu.memory_space<vmem>>, %arg10: memref<512x128xbf16, #tpu.memory_space<vmem>>, %arg11: memref<1x128xf32, #tpu.memory_space<vmem>>, %arg12: memref<16x128xf32, #tpu.memory_space<vmem>>) attributes {dimension_semantics = [#tpu.dimension_semantics<parallel>], iteration_bounds = array<i64: 1>, scalar_prefetch = 0 : i64, scratch_operands = 0 : i64, tpu.core_type = #tpu.core_type<tc>, window_params = [{transform_indices = @transform_0, window_bounds = array<i64: 16, 16>}, {pipeline_mode = #tpu.pipeline_mode<synchronous>, transform_indices = @transform_1, window_bounds = array<i64: 16, 512>}, {pipeline_mode = #tpu.pipeline_mode<synchronous>, transform_indices = @transform_2, window_bounds = array<i64: 1, 512>}, {pipeline_mode = #tpu.pipeline_mode<synchronous>, transform_indices = @transform_3, window_bounds = array<i64: 512, 512>}, {pipeline_mode = #tpu.pipeline_mode<synchronous>, transform_indices = @transform_4, window_bounds = array<i64: 1, 512>}, {pipeline_mode = #tpu.pipeline_mode<synchronous>, transform_indices = @transform_5, window_bounds = array<i64: 512, 512>}, {pipeline_mode = #tpu.pipeline_mode<synchronous>, transform_indices = @transform_6, window_bounds = array<i64: 1, 512>}, {pipeline_mode = #tpu.pipeline_mode<synchronous>, transform_indices = @transform_7, window_bounds = array<i64: 512, 512>}, {pipeline_mode = #tpu.pipeline_mode<synchronous>, transform_indices = @transform_8, window_bounds = array<i64: 1, 512>}, {pipeline_mode = #tpu.pipeline_mode<synchronous>, transform_indices = @transform_9, window_bounds = array<i64: 512, 128>}, {pipeline_mode = #tpu.pipeline_mode<synchronous>, transform_indices = @transform_10, window_bounds = array<i64: 1, 128>}, {transform_indices = @transform_11, window_bounds = array<i64: 16, 128>}]} {
    %c0 = arith.constant 0 : index
    %c0_0 = arith.constant 0 : index
    %0 = vector.load %arg1[%c0, %c0_0] : memref<16x16xbf16, #tpu.memory_space<vmem>>, vector<16x16xbf16>
    %c0_1 = arith.constant 0 : index
    %c0_2 = arith.constant 0 : index
    %1 = vector.load %arg2[%c0_1, %c0_2] : memref<16x512xbf16, #tpu.memory_space<vmem>>, vector<16x512xbf16>
    %cst = arith.constant dense<0.000000e+00> : vector<16x512xf32>
    %2 = tpu.matmul %0, %1, %cst {dimension_numbers = #tpu.dot_dimension_numbers<[1], [0], [0], [1], [0, 0, 1, 1], [], []>} : vector<16x16xbf16>, vector<16x512xbf16>, vector<16x512xf32> -> vector<16x512xf32>
    %c0_3 = arith.constant 0 : index
    %c0_4 = arith.constant 0 : index
    %3 = vector.load %arg3[%c0_3, %c0_4] : memref<1x512xf32, #tpu.memory_space<vmem>>, vector<1x512xf32>
    %4 = vector.broadcast %3 : vector<1x512xf32> to vector<16x512xf32>
    %5 = arith.addf %2, %4 : vector<16x512xf32>
    %cst_5 = arith.constant 0.000000e+00 : f32
    %6 = vector.broadcast %cst_5 : f32 to vector<16x512xf32>
    %7 = arith.maximumf %5, %6 : vector<16x512xf32>
    %8 = arith.truncf %7 : vector<16x512xf32> to vector<16x512xbf16>
    %c0_6 = arith.constant 0 : index
    %c0_7 = arith.constant 0 : index
    %9 = vector.load %arg4[%c0_6, %c0_7] : memref<512x512xbf16, #tpu.memory_space<vmem>>, vector<512x512xbf16>
    %cst_8 = arith.constant dense<0.000000e+00> : vector<16x512xf32>
    %10 = tpu.matmul %8, %9, %cst_8 {dimension_numbers = #tpu.dot_dimension_numbers<[1], [0], [0], [1], [0, 0, 1, 1], [], []>} : vector<16x512xbf16>, vector<512x512xbf16>, vector<16x512xf32> -> vector<16x512xf32>
    %c0_9 = arith.constant 0 : index
    %c0_10 = arith.constant 0 : index
    %11 = vector.load %arg5[%c0_9, %c0_10] : memref<1x512xf32, #tpu.memory_space<vmem>>, vector<1x512xf32>
    %12 = vector.broadcast %11 : vector<1x512xf32> to vector<16x512xf32>
    %13 = arith.addf %10, %12 : vector<16x512xf32>
    %cst_11 = arith.constant 0.000000e+00 : f32
    %14 = vector.broadcast %cst_11 : f32 to vector<16x512xf32>
    %15 = arith.maximumf %13, %14 : vector<16x512xf32>
    %16 = arith.truncf %15 : vector<16x512xf32> to vector<16x512xbf16>
    %c0_12 = arith.constant 0 : index
    %c0_13 = arith.constant 0 : index
    %17 = vector.load %arg6[%c0_12, %c0_13] : memref<512x512xbf16, #tpu.memory_space<vmem>>, vector<512x512xbf16>
    %cst_14 = arith.constant dense<0.000000e+00> : vector<16x512xf32>
    %18 = tpu.matmul %16, %17, %cst_14 {dimension_numbers = #tpu.dot_dimension_numbers<[1], [0], [0], [1], [0, 0, 1, 1], [], []>} : vector<16x512xbf16>, vector<512x512xbf16>, vector<16x512xf32> -> vector<16x512xf32>
    %c0_15 = arith.constant 0 : index
    %c0_16 = arith.constant 0 : index
    %19 = vector.load %arg7[%c0_15, %c0_16] : memref<1x512xf32, #tpu.memory_space<vmem>>, vector<1x512xf32>
    %20 = vector.broadcast %19 : vector<1x512xf32> to vector<16x512xf32>
    %21 = arith.addf %18, %20 : vector<16x512xf32>
    %cst_17 = arith.constant 0.000000e+00 : f32
    %22 = vector.broadcast %cst_17 : f32 to vector<16x512xf32>
    %23 = arith.maximumf %21, %22 : vector<16x512xf32>
    %24 = arith.truncf %23 : vector<16x512xf32> to vector<16x512xbf16>
    %c0_18 = arith.constant 0 : index
    %c0_19 = arith.constant 0 : index
    %25 = vector.load %arg8[%c0_18, %c0_19] : memref<512x512xbf16, #tpu.memory_space<vmem>>, vector<512x512xbf16>
    %cst_20 = arith.constant dense<0.000000e+00> : vector<16x512xf32>
    %26 = tpu.matmul %24, %25, %cst_20 {dimension_numbers = #tpu.dot_dimension_numbers<[1], [0], [0], [1], [0, 0, 1, 1], [], []>} : vector<16x512xbf16>, vector<512x512xbf16>, vector<16x512xf32> -> vector<16x512xf32>
    %c0_21 = arith.constant 0 : index
    %c0_22 = arith.constant 0 : index
    %27 = vector.load %arg9[%c0_21, %c0_22] : memref<1x512xf32, #tpu.memory_space<vmem>>, vector<1x512xf32>
    %28 = vector.broadcast %27 : vector<1x512xf32> to vector<16x512xf32>
    %29 = arith.addf %26, %28 : vector<16x512xf32>
    %cst_23 = arith.constant 0.000000e+00 : f32
    %30 = vector.broadcast %cst_23 : f32 to vector<16x512xf32>
    %31 = arith.maximumf %29, %30 : vector<16x512xf32>
    %32 = arith.truncf %31 : vector<16x512xf32> to vector<16x512xbf16>
    %c0_24 = arith.constant 0 : index
    %c0_25 = arith.constant 0 : index
    %33 = vector.load %arg10[%c0_24, %c0_25] : memref<512x128xbf16, #tpu.memory_space<vmem>>, vector<512x128xbf16>
    %cst_26 = arith.constant dense<0.000000e+00> : vector<16x128xf32>
    %34 = tpu.matmul %32, %33, %cst_26 {dimension_numbers = #tpu.dot_dimension_numbers<[1], [0], [0], [1], [0, 0, 1, 1], [], []>} : vector<16x512xbf16>, vector<512x128xbf16>, vector<16x128xf32> -> vector<16x128xf32>
    %c0_27 = arith.constant 0 : index
    %c0_28 = arith.constant 0 : index
    %35 = vector.load %arg11[%c0_27, %c0_28] : memref<1x128xf32, #tpu.memory_space<vmem>>, vector<1x128xf32>
    %36 = vector.broadcast %35 : vector<1x128xf32> to vector<16x128xf32>
    %37 = arith.addf %34, %36 : vector<16x128xf32>
    %c0_29 = arith.constant 0 : index
    %c0_30 = arith.constant 0 : index
    %38 = vector.load %arg12[%c0_29, %c0_30] : memref<16x128xf32, #tpu.memory_space<vmem>>, vector<16x128xf32>
    tpu.vector_store %arg12[%c0_29, %c0_30], %37 {strides = array<i32>} : memref<16x128xf32, #tpu.memory_space<vmem>>, vector<16x128xf32>,
    return
  }
  func.func @transform_0(%arg0: i32) -> (i32, i32) {
    %c0_i32 = arith.constant 0 : i32
    %c0_i32_0 = arith.constant 0 : i32
    return %arg0, %c0_i32 : i32, i32
  }
  func.func @transform_1(%arg0: i32) -> (i32, i32) {
    %c0_i32 = arith.constant 0 : i32
    %c0_i32_0 = arith.constant 0 : i32
    %c0_i32_1 = arith.constant 0 : i32
    return %c0_i32, %c0_i32_0 : i32, i32
  }
  func.func @transform_2(%arg0: i32) -> (i32, i32) {
    %c0_i32 = arith.constant 0 : i32
    %c0_i32_0 = arith.constant 0 : i32
    %c0_i32_1 = arith.constant 0 : i32
    return %c0_i32, %c0_i32_0 : i32, i32
  }
  func.func @transform_3(%arg0: i32) -> (i32, i32) {
    %c0_i32 = arith.constant 0 : i32
    %c0_i32_0 = arith.constant 0 : i32
    %c0_i32_1 = arith.constant 0 : i32
    return %c0_i32, %c0_i32_0 : i32, i32
  }
  func.func @transform_4(%arg0: i32) -> (i32, i32) {
    %c0_i32 = arith.constant 0 : i32
    %c0_i32_0 = arith.constant 0 : i32
    %c0_i32_1 = arith.constant 0 : i32
    return %c0_i32, %c0_i32_0 : i32, i32
  }
  func.func @transform_5(%arg0: i32) -> (i32, i32) {
    %c0_i32 = arith.constant 0 : i32
    %c0_i32_0 = arith.constant 0 : i32
    %c0_i32_1 = arith.constant 0 : i32
    return %c0_i32, %c0_i32_0 : i32, i32
  }
  func.func @transform_6(%arg0: i32) -> (i32, i32) {
    %c0_i32 = arith.constant 0 : i32
    %c0_i32_0 = arith.constant 0 : i32
    %c0_i32_1 = arith.constant 0 : i32
    return %c0_i32, %c0_i32_0 : i32, i32
  }
  func.func @transform_7(%arg0: i32) -> (i32, i32) {
    %c0_i32 = arith.constant 0 : i32
    %c0_i32_0 = arith.constant 0 : i32
    %c0_i32_1 = arith.constant 0 : i32
    return %c0_i32, %c0_i32_0 : i32, i32
  }
  func.func @transform_8(%arg0: i32) -> (i32, i32) {
    %c0_i32 = arith.constant 0 : i32
    %c0_i32_0 = arith.constant 0 : i32
    %c0_i32_1 = arith.constant 0 : i32
    return %c0_i32, %c0_i32_0 : i32, i32
  }
  func.func @transform_9(%arg0: i32) -> (i32, i32) {
    %c0_i32 = arith.constant 0 : i32
    %c0_i32_0 = arith.constant 0 : i32
    %c0_i32_1 = arith.constant 0 : i32
    return %c0_i32, %c0_i32_0 : i32, i32
  }
  func.func @transform_10(%arg0: i32) -> (i32, i32) {
    %c0_i32 = arith.constant 0 : i32
    %c0_i32_0 = arith.constant 0 : i32
    %c0_i32_1 = arith.constant 0 : i32
    return %c0_i32, %c0_i32_0 : i32, i32
  }
  func.func @transform_11(%arg0: i32) -> (i32, i32) {
    %c0_i32 = arith.constant 0 : i32
    %c0_i32_0 = arith.constant 0 : i32
    return %arg0, %c0_i32 : i32, i32
  }
}

</mosaic_0001>

<llo_original>
// kernel: tpu_custom_call.1
$region0: #{tpu_custom_call.1}
  #allocation0 [shape = 'u32[]', space=smem, size = 0x4, offset = 0x4, fixed_abs, tag = 'smem constant byte address 0x4 - core index']
  #allocation1 [shape = 'u32[144,128]{1,0:T(1,128)}', space=vmem, size = 0x12000, scoped, tag = 'internal scratch']
  %s0 = inlined_call_operand.hbm [shape: bf16[16,16], index: 0, kind: input, shape index: {}]
  %s1 = inlined_call_operand.hbm [shape: bf16[16,512], index: 1, kind: input, shape index: {}]
  %s2 = inlined_call_operand.vmem [shape: f32[1,512], index: 2, kind: input, shape index: {}]
  %s3 = inlined_call_operand.hbm [shape: bf16[512,512], index: 3, kind: input, shape index: {}]
  %s4 = inlined_call_operand.vmem [shape: f32[1,512], index: 4, kind: input, shape index: {}]
  %s5 = inlined_call_operand.hbm [shape: bf16[512,512], index: 5, kind: input, shape index: {}]
  %s6 = inlined_call_operand.vmem [shape: f32[1,512], index: 6, kind: input, shape index: {}]
  %s7 = inlined_call_operand.hbm [shape: bf16[512,512], index: 7, kind: input, shape index: {}]
  %s8 = inlined_call_operand.vmem [shape: f32[1,512], index: 8, kind: input, shape index: {}]
  %s9 = inlined_call_operand.hbm [shape: bf16[512,128], index: 9, kind: input, shape index: {}]
  %s10 = inlined_call_operand.vmem [shape: f32[1,128], index: 10, kind: input, shape index: {}]
  %s11 = inlined_call_operand.hbm [shape: f32[16,128], index: 11, kind: output, shape index: {}]
  %s12 = sld [smem:[#allocation0]]
  $region78: #{tpu_custom_call.1} parent=0
    _
  %s14 = ssub.s32 1, %s12
  %s15 = scalar_select 0, %s14, %s12
  $region1: #{tpu_custom_call.1} parent=0
    #allocation2 [shape = 'u8[4096]{0}', space=vmem, size = 0x1000, scoped, tag = 'input window, operand 0, single buffered']
    #allocation3 [shape = 's32[1]{0}', space=sflag, size = 0x4, scoped, tag = 'scoped memory for tpu_custom_call.1']
    #allocation4 [shape = 's32[1]{0}', space=sflag, size = 0x4, scoped, tag = 'scoped memory for tpu_custom_call.1']
    #allocation5 [shape = 'u8[16384]{0}', space=vmem, size = 0x4000, scoped, tag = 'input window, operand 1, single buffered']
    #allocation6 [shape = 's32[1]{0}', space=sflag, size = 0x4, scoped, tag = 'scoped memory for tpu_custom_call.1']
    #allocation7 [shape = 'u8[524288]{0}', space=vmem, size = 0x80000, scoped, tag = 'input window, operand 3, single buffered']
    #allocation8 [shape = 'u8[524288]{0}', space=vmem, size = 0x80000, scoped, tag = 'input window, operand 5, single buffered']
    #allocation9 [shape = 's32[1]{0}', space=sflag, size = 0x4, scoped, tag = 'scoped memory for tpu_custom_call.1']
    #allocation10 [shape = 'u8[524288]{0}', space=vmem, size = 0x80000, scoped, tag = 'input window, operand 7, single buffered']
    #allocation11 [shape = 'u8[131072]{0}', space=vmem, size = 0x20000, scoped, tag = 'input window, operand 9, single buffered']
    #allocation12 [shape = 's32[1]{0}', space=sflag, size = 0x4, scoped, tag = 'scoped memory for tpu_custom_call.1']
    #allocation13 [shape = 'u8[8192]{0}', space=vmem, size = 0x2000, scoped, tag = 'output window, operand 0, single buffered']
    %16 = vsyncpa [#allocation3], 0
    %17 = vsyncpa [#allocation6], 0
    %18 = vsyncpa [#allocation9], 0
    %19 = vsyncpa [#allocation12], 0
    %20 = vsyncpa [#allocation4], 0
    // Predicated region
    $region2: #{tpu_custom_call.1} parent=1 // pred_check
      _
    $region3: #{tpu_custom_call.1} parent=1 // pred_check_branch
      %22 = sbr.rel (0) target = $region5
    $region4: #{tpu_custom_call.1} parent=1 // pred_region
      %s24 = ssub.s32 128, 128
      %25 = vsyncadd [#allocation3], %s24
      %s26 = sshll.u32 [#allocation2], 4
      %s27 = int_to_ptr.vmem [resolvable:$true] %s26
      %32 = dma.hbm_to_vmem [thread:$0]  %s0, 128, %s27, [#allocation3], 64, 64, 4
    $region5: #{tpu_custom_call.1} parent=1 // pred_fallthru
      _
    // Predicated region
    $region6: #{tpu_custom_call.1} parent=1 // pred_check
      _
    $region7: #{tpu_custom_call.1} parent=1 // pred_check_branch
      %34 = sbr.rel (0) target = $region9
    $region8: #{tpu_custom_call.1} parent=1 // pred_region
      %s36 = ssub.s32 512, 512
      %37 = vsyncadd [#allocation6], %s36
      %s38 = sshll.u32 [#allocation5], 4
      %s39 = int_to_ptr.vmem [resolvable:$true] %s38
      %44 = dma.hbm_to_vmem [thread:$0]  %s1, 512, %s39, [#allocation6], 256, 256, 16
    $region9: #{tpu_custom_call.1} parent=1 // pred_fallthru
      _
    // Predicated region
    $region10: #{tpu_custom_call.1} parent=1 // pred_check
      _
    $region11: #{tpu_custom_call.1} parent=1 // pred_check_branch
      %46 = sbr.rel (0) target = $region13
    $region12: #{tpu_custom_call.1} parent=1 // pred_region
      _
    $region13: #{tpu_custom_call.1} parent=1 // pred_fallthru
      _
    // Predicated region
    $region14: #{tpu_custom_call.1} parent=1 // pred_check
      _
    $region15: #{tpu_custom_call.1} parent=1 // pred_check_branch
      %48 = sbr.rel (0) target = $region17
    $region16: #{tpu_custom_call.1} parent=1 // pred_region
      %s50 = ssub.s32 16384, 16384
      %51 = vsyncadd [#allocation6], %s50
      %s52 = sshll.u32 [#allocation7], 4
      %s53 = int_to_ptr.vmem [resolvable:$true] %s52
      %58 = dma.hbm_to_vmem [thread:$0]  %s3, 16384, %s53, [#allocation6], 256, 256, 16
    $region17: #{tpu_custom_call.1} parent=1 // pred_fallthru
      _
    // Predicated region
    $region18: #{tpu_custom_call.1} parent=1 // pred_check
      _
    $region19: #{tpu_custom_call.1} parent=1 // pred_check_branch
      %60 = sbr.rel (0) target = $region21
    $region20: #{tpu_custom_call.1} parent=1 // pred_region
      _
    $region21: #{tpu_custom_call.1} parent=1 // pred_fallthru
      _
    // Predicated region
    $region22: #{tpu_custom_call.1} parent=1 // pred_check
      _
    $region23: #{tpu_custom_call.1} parent=1 // pred_check_branch
      %62 = sbr.rel (0) target = $region25
    $region24: #{tpu_custom_call.1} parent=1 // pred_region
      %s64 = ssub.s32 16384, 16384
      %65 = vsyncadd [#allocation9], %s64
      %s66 = sshll.u32 [#allocation8], 4
      %s67 = int_to_ptr.vmem [resolvable:$true] %s66
      %72 = dma.hbm_to_vmem [thread:$0]  %s5, 16384, %s67, [#allocation9], 256, 256, 16
    $region25: #{tpu_custom_call.1} parent=1 // pred_fallthru
      _
    // Predicated region
    $region26: #{tpu_custom_call.1} parent=1 // pred_check
      _
    $region27: #{tpu_custom_call.1} parent=1 // pred_check_branch
      %74 = sbr.rel (0) target = $region29
    $region28: #{tpu_custom_call.1} parent=1 // pred_region
      _
    $region29: #{tpu_custom_call.1} parent=1 // pred_fallthru
      _
    // Predicated region
    $region30: #{tpu_custom_call.1} parent=1 // pred_check
      _
    $region31: #{tpu_custom_call.1} parent=1 // pred_check_branch
      %76 = sbr.rel (0) target = $region33
    $region32: #{tpu_custom_call.1} parent=1 // pred_region
      %s78 = ssub.s32 16384, 16384
      %79 = vsyncadd [#allocation9], %s78
      %s80 = sshll.u32 [#allocation10], 4
      %s81 = int_to_ptr.vmem [resolvable:$true] %s80
      %86 = dma.hbm_to_vmem [thread:$0]  %s7, 16384, %s81, [#allocation9], 256, 256, 16
    $region33: #{tpu_custom_call.1} parent=1 // pred_fallthru
      _
    // Predicated region
    $region34: #{tpu_custom_call.1} parent=1 // pred_check
      _
    $region35: #{tpu_custom_call.1} parent=1 // pred_check_branch
      %88 = sbr.rel (0) target = $region37
    $region36: #{tpu_custom_call.1} parent=1 // pred_region
      _
    $region37: #{tpu_custom_call.1} parent=1 // pred_fallthru
      _
    // Predicated region
    $region38: #{tpu_custom_call.1} parent=1 // pred_check
      _
    $region39: #{tpu_custom_call.1} parent=1 // pred_check_branch
      %90 = sbr.rel (0) target = $region41
    $region40: #{tpu_custom_call.1} parent=1 // pred_region
      %s92 = ssub.s32 4096, 4096
      %93 = vsyncadd [#allocation12], %s92
      %s94 = sshll.u32 [#allocation11], 4
      %s95 = int_to_ptr.vmem [resolvable:$true] %s94
      %100 = dma.hbm_to_vmem [thread:$0]  %s9, 4096, %s95, [#allocation12], 64, 64, 4
    $region41: #{tpu_custom_call.1} parent=1 // pred_fallthru
      _
    // Predicated region
    $region42: #{tpu_custom_call.1} parent=1 // pred_check
      _
    $region43: #{tpu_custom_call.1} parent=1 // pred_check_branch
      %102 = sbr.rel (0) target = $region45
    $region44: #{tpu_custom_call.1} parent=1 // pred_region
      _
    $region45: #{tpu_custom_call.1} parent=1 // pred_fallthru
      _
    // Predicated region
    $region46: #{tpu_custom_call.1} parent=1 // pred_check
      _
    $region47: #{tpu_custom_call.1} parent=1 // pred_check_branch
      %104 = sbr.rel (0) target = $region49
    $region48: #{tpu_custom_call.1} parent=1 // pred_region
      %105 = dma.done [#allocation3], 128
    $region49: #{tpu_custom_call.1} parent=1 // pred_fallthru
      _
    // Predicated region
    $region50: #{tpu_custom_call.1} parent=1 // pred_check
      _
    $region51: #{tpu_custom_call.1} parent=1 // pred_check_branch
      %107 = sbr.rel (0) target = $region53
    $region52: #{tpu_custom_call.1} parent=1 // pred_region
      %108 = dma.done [#allocation6], 512
    $region53: #{tpu_custom_call.1} parent=1 // pred_fallthru
      _
    // Predicated region
    $region54: #{tpu_custom_call.1} parent=1 // pred_check
      _
    $region55: #{tpu_custom_call.1} parent=1 // pred_check_branch
      %110 = sbr.rel (0) target = $region57
    $region56: #{tpu_custom_call.1} parent=1 // pred_region
      %111 = dma.done [#allocation6], 16384
    $region57: #{tpu_custom_call.1} parent=1 // pred_fallthru
      _
    // Predicated region
    $region58: #{tpu_custom_call.1} parent=1 // pred_check
      _
    $region59: #{tpu_custom_call.1} parent=1 // pred_check_branch
      %113 = sbr.rel (0) target = $region61
    $region60: #{tpu_custom_call.1} parent=1 // pred_region
      %114 = dma.done [#allocation9], 16384
    $region61: #{tpu_custom_call.1} parent=1 // pred_fallthru
      _
    // Predicated region
    $region62: #{tpu_custom_call.1} parent=1 // pred_check
      _
    $region63: #{tpu_custom_call.1} parent=1 // pred_check_branch
      %116 = sbr.rel (0) target = $region65
    $region64: #{tpu_custom_call.1} parent=1 // pred_region
      %117 = dma.done [#allocation9], 16384
    $region65: #{tpu_custom_call.1} parent=1 // pred_fallthru
      _
    // Predicated region
    $region66: #{tpu_custom_call.1} parent=1 // pred_check
      _
    $region67: #{tpu_custom_call.1} parent=1 // pred_check_branch
      %119 = sbr.rel (0) target = $region69
    $region68: #{tpu_custom_call.1} parent=1 // pred_region
      %120 = dma.done [#allocation12], 4096
    $region69: #{tpu_custom_call.1} parent=1 // pred_fallthru
      _
    %v122 = vld [vmem:[#allocation2] sm:$0xf]
    %v123 = vld [vmem:[#allocation2 + $0x4] sm:$0xf]
    %v124 = vld [vmem:[#allocation5] sm:$0xff]
    %v125 = vld [vmem:[#allocation5 + $0x8] sm:$0xff]
    %v126 = vld [vmem:[#allocation5 + $0x10] sm:$0xff]
    %v127 = vld [vmem:[#allocation5 + $0x18] sm:$0xff]
    %v128 = vld [vmem:[%s2] sm:$0xf]
    %v130 = vlaneseq
    %v131 = vshrl.u32 %v130, 7
    %v132 = vsub.s32 0, %v131
    %v133 = vrot.slane %v128, %v132
    %v134 = vlaneseq
    %v135 = vshrl.u32 %v134, 7
    %v136 = vsub.s32 1, %v135
    %v137 = vrot.slane %v128, %v136
    %v138 = vlaneseq
    %v139 = vshrl.u32 %v138, 7
    %v140 = vsub.s32 2, %v139
    %v141 = vrot.slane %v128, %v140
    %v142 = vlaneseq
    %v143 = vshrl.u32 %v142, 7
    %v144 = vsub.s32 3, %v143
    %v145 = vrot.slane %v128, %v144
    %v152 = vunpack.c.l.b16 %v122
    %v153 = vunpack.c.l.b16 %v123
    %v154 = vpack.c.b16 %v153, %v152
    %v159 = vunpack.c.l.b16 %v124
    %v160 = vunpack.c.h.b16 %v124
    %v161 = vunpack.c.l.b16 %v125
    %v162 = vunpack.c.h.b16 %v125
    %v163 = vunpack.c.l.b16 %v126
    %v164 = vunpack.c.h.b16 %v126
    %v165 = vunpack.c.l.b16 %v127
    %v166 = vunpack.c.h.b16 %v127
    %v167 = vpack.c.b16 %v163, %v159
    %v168 = vpack.c.b16 %v164, %v160
    %v169 = vpack.c.b16 %v165, %v161
    %v170 = vpack.c.b16 %v166, %v162
    %vm175 = vcmask 130048
    %v177 = vsel %vm175, %v154, 0
    %179 = vmatprep.subr.bf16.mxu0 %v168
    %180 = vmatpush1.bf16.msra.mxu0 %v167
    %181 = vmatprep.subr.bf16.mxu0 0
    %182 = vmatpush1.bf16.msra.mxu0 0
    %183 = vmatprep.subr.bf16.mxu0 0
    %184 = vmatpush1.bf16.msra.mxu0 0
    %185 = vmatprep.subr.bf16.mxu0 0
    %186 = vmatpush1.bf16.msra.mxu0 0
    %187 = vmatprep.subr.bf16.mxu0 0
    %188 = vmatpush1.bf16.msra.mxu0 0
    %189 = vmatprep.subr.bf16.mxu0 0
    %190 = vmatpush1.bf16.msra.mxu0 0
    %191 = vmatprep.subr.bf16.mxu0 0
    %192 = vmatpush1.bf16.msra.mxu0 0
    %193 = vmatprep.subr.bf16.mxu0 0
    %194 = vmatpush1.bf16.msra.mxu0 0
    %195 = vmatprep.subr.bf16.mxu0 0
    %196 = vmatpush1.bf16.msra.mxu0 0
    %197 = vmatprep.subr.bf16.mxu0 0
    %198 = vmatpush1.bf16.msra.mxu0 0
    %199 = vmatprep.subr.bf16.mxu0 0
    %200 = vmatpush1.bf16.msra.mxu0 0
    %201 = vmatprep.subr.bf16.mxu0 0
    %202 = vmatpush1.bf16.msra.mxu0 0
    %203 = vmatprep.subr.bf16.mxu0 0
    %204 = vmatpush1.bf16.msra.mxu0 0
    %205 = vmatprep.subr.bf16.mxu0 0
    %206 = vmatpush1.bf16.msra.mxu0 0
    %207 = vmatprep.subr.bf16.mxu0 0
    %208 = vmatpush1.bf16.msra.mxu0 0
    %209 = vmatprep.subr.bf16.mxu0 0
    %210 = vmatpush1.bf16.msra.mxu0 0
    %211 = vmatprep.mubr.bf16.mxu0 0
    %212 = vmatmul.mubr.bf16.gmra.mrb[0].mxu0 %v177
    %v213 = vpop.f32.mrb[0].mxu0
    %v214 = vadd.f32 %v133, %v213
    %v215 = vpop.f32.mrb[0].mxu0
    %v216 = vadd.f32 %v137, %v215
    %v217 = vpop.f32.mrb[0].mxu0
    %v218 = vadd.f32 %v133, %v217
    %v219 = vpop.f32.mrb[0].mxu0
    %v220 = vadd.f32 %v137, %v219
    %221 = vdwg.mxu0
    %222 = vmatprep.subr.bf16.mxu0 %v170
    %223 = vmatpush1.bf16.msra.mxu0 %v169
    %224 = vmatprep.subr.bf16.mxu0 0
    %225 = vmatpush1.bf16.msra.mxu0 0
    %226 = vmatprep.subr.bf16.mxu0 0
    %227 = vmatpush1.bf16.msra.mxu0 0
    %228 = vmatprep.subr.bf16.mxu0 0
    %229 = vmatpush1.bf16.msra.mxu0 0
    %230 = vmatprep.subr.bf16.mxu0 0
    %231 = vmatpush1.bf16.msra.mxu0 0
    %232 = vmatprep.subr.bf16.mxu0 0
    %233 = vmatpush1.bf16.msra.mxu0 0
    %234 = vmatprep.subr.bf16.mxu0 0
    %235 = vmatpush1.bf16.msra.mxu0 0
    %236 = vmatprep.subr.bf16.mxu0 0
    %237 = vmatpush1.bf16.msra.mxu0 0
    %238 = vmatprep.subr.bf16.mxu0 0
    %239 = vmatpush1.bf16.msra.mxu0 0
    %240 = vmatprep.subr.bf16.mxu0 0
    %241 = vmatpush1.bf16.msra.mxu0 0
    %242 = vmatprep.subr.bf16.mxu0 0
    %243 = vmatpush1.bf16.msra.mxu0 0
    %244 = vmatprep.subr.bf16.mxu0 0
    %245 = vmatpush1.bf16.msra.mxu0 0
    %246 = vmatprep.subr.bf16.mxu0 0
    %247 = vmatpush1.bf16.msra.mxu0 0
    %248 = vmatprep.subr.bf16.mxu0 0
    %249 = vmatpush1.bf16.msra.mxu0 0
    %250 = vmatprep.subr.bf16.mxu0 0
    %251 = vmatpush1.bf16.msra.mxu0 0
    %252 = vmatprep.subr.bf16.mxu0 0
    %253 = vmatpush1.bf16.msra.mxu0 0
    %254 = vmatprep.mubr.bf16.mxu0 0
    %255 = vmatmul.mubr.bf16.gmra.mrb[0].mxu0 %v177
    %v256 = vpop.f32.mrb[0].mxu0
    %v257 = vadd.f32 %v141, %v256
    %v258 = vpop.f32.mrb[0].mxu0
    %v259 = vadd.f32 %v145, %v258
    %v260 = vpop.f32.mrb[0].mxu0
    %v261 = vadd.f32 %v141, %v260
    %v262 = vpop.f32.mrb[0].mxu0
    %v263 = vadd.f32 %v145, %v262
    %264 = vdwg.mxu0
    %v265 = vmax.f32 %v214, 0.0
    %v266 = vmax.f32 %v216, 0.0
    %v267 = vmax.f32 %v257, 0.0
    %v268 = vmax.f32 %v259, 0.0
    %v269 = vmax.f32 %v218, 0.0
    %v270 = vmax.f32 %v220, 0.0
    %v271 = vmax.f32 %v261, 0.0
    %v272 = vmax.f32 %v263, 0.0
    %v273 = vpack.c.bf16 %v269, %v265
    %v274 = vpack.c.bf16 %v270, %v266
    %v275 = vpack.c.bf16 %v271, %v267
    %v276 = vpack.c.bf16 %v272, %v268
    %v277 = vld [vmem:[#allocation7] sm:$0xff]
    %v278 = vld [vmem:[#allocation7 + $0x8] sm:$0xff]
    %v279 = vld [vmem:[#allocation7 + $0x10] sm:$0xff]
    %v280 = vld [vmem:[#allocation7 + $0x18] sm:$0xff]
    %v281 = vld [vmem:[#allocation7 + $0x20] sm:$0xff]
    %v282 = vld [vmem:[#allocation7 + $0x28] sm:$0xff]
    %v283 = vld [vmem:[#allocation7 + $0x30] sm:$0xff]
    %v284 = vld [vmem:[#allocation7 + $0x38] sm:$0xff]
    %v285 = vld [vmem:[#allocation7 + $0x40] sm:$0xff]
    %v286 = vld [vmem:[#allocation7 + $0x48] sm:$0xff]
    %v287 = vld [vmem:[#allocation7 + $0x50] sm:$0xff]
    %v288 = vld [vmem:[#allocation7 + $0x58] sm:$0xff]
    %v289 = vld [vmem:[#allocation7 + $0x60] sm:$0xff]
    %v290 = vld [vmem:[#allocation7 + $0x68] sm:$0xff]
    %v291 = vld [vmem:[#allocation7 + $0x70] sm:$0xff]
    %v292 = vld [vmem:[#allocation7 + $0x78] sm:$0xff]
    %v293 = vld [vmem:[#allocation7 + $0x80] sm:$0xff]
    %v294 = vld [vmem:[#allocation7 + $0x88] sm:$0xff]
    %v295 = vld [vmem:[#allocation7 + $0x90] sm:$0xff]
    %v296 = vld [vmem:[#allocation7 + $0x98] sm:$0xff]
    %v297 = vld [vmem:[#allocation7 + $0xa0] sm:$0xff]
    %v298 = vld [vmem:[#allocation7 + $0xa8] sm:$0xff]
    %v299 = vld [vmem:[#allocation7 + $0xb0] sm:$0xff]
    %v300 = vld [vmem:[#allocation7 + $0xb8] sm:$0xff]
    %v301 = vld [vmem:[#allocation7 + $0xc0] sm:$0xff]
    %v302 = vld [vmem:[#allocation7 + $0xc8] sm:$0xff]
    %v303 = vld [vmem:[#allocation7 + $0xd0] sm:$0xff]
    %v304 = vld [vmem:[#allocation7 + $0xd8] sm:$0xff]
    %v305 = vld [vmem:[#allocation7 + $0xe0] sm:$0xff]
    %v306 = vld [vmem:[#allocation7 + $0xe8] sm:$0xff]
    %v307 = vld [vmem:[#allocation7 + $0xf0] sm:$0xff]
    %v308 = vld [vmem:[#allocation7 + $0xf8] sm:$0xff]
    %v309 = vld [vmem:[#allocation7 + $0x100] sm:$0xff]
    %v310 = vld [vmem:[#allocation7 + $0x108] sm:$0xff]
    %v311 = vld [vmem:[#allocation7 + $0x110] sm:$0xff]
    %v312 = vld [vmem:[#allocation7 + $0x118] sm:$0xff]
    %v313 = vld [vmem:[#allocation7 + $0x120] sm:$0xff]
    %v314 = vld [vmem:[#allocation7 + $0x128] sm:$0xff]
    %v315 = vld [vmem:[#allocation7 + $0x130] sm:$0xff]
    %v316 = vld [vmem:[#allocation7 + $0x138] sm:$0xff]
    %v317 = vld [vmem:[#allocation7 + $0x140] sm:$0xff]
    %v318 = vld [vmem:[#allocation7 + $0x148] sm:$0xff]
    %v319 = vld [vmem:[#allocation7 + $0x150] sm:$0xff]
    %v320 = vld [vmem:[#allocation7 + $0x158] sm:$0xff]
    %v321 = vld [vmem:[#allocation7 + $0x160] sm:$0xff]
    %v322 = vld [vmem:[#allocation7 + $0x168] sm:$0xff]
    %v323 = vld [vmem:[#allocation7 + $0x170] sm:$0xff]
    %v324 = vld [vmem:[#allocation7 + $0x178] sm:$0xff]
    %v325 = vld [vmem:[#allocation7 + $0x180] sm:$0xff]
    %v326 = vld [vmem:[#allocation7 + $0x188] sm:$0xff]
    %v327 = vld [vmem:[#allocation7 + $0x190] sm:$0xff]
    %v328 = vld [vmem:[#allocation7 + $0x198] sm:$0xff]
    %v329 = vld [vmem:[#allocation7 + $0x1a0] sm:$0xff]
    %v330 = vld [vmem:[#allocation7 + $0x1a8] sm:$0xff]
    %v331 = vld [vmem:[#allocation7 + $0x1b0] sm:$0xff]
    %v332 = vld [vmem:[#allocation7 + $0x1b8] sm:$0xff]
    %v333 = vld [vmem:[#allocation7 + $0x1c0] sm:$0xff]
    %v334 = vld [vmem:[#allocation7 + $0x1c8] sm:$0xff]
    %v335 = vld [vmem:[#allocation7 + $0x1d0] sm:$0xff]
    %v336 = vld [vmem:[#allocation7 + $0x1d8] sm:$0xff]
    %v337 = vld [vmem:[#allocation7 + $0x1e0] sm:$0xff]
    %v338 = vld [vmem:[#allocation7 + $0x1e8] sm:$0xff]
    %v339 = vld [vmem:[#allocation7 + $0x1f0] sm:$0xff]
    %v340 = vld [vmem:[#allocation7 + $0x1f8] sm:$0xff]
    %v341 = vld [vmem:[#allocation7 + $0x200] sm:$0xff]
    %v342 = vld [vmem:[#allocation7 + $0x208] sm:$0xff]
    %v343 = vld [vmem:[#allocation7 + $0x210] sm:$0xff]
    %v344 = vld [vmem:[#allocation7 + $0x218] sm:$0xff]
    %v345 = vld [vmem:[#allocation7 + $0x220] sm:$0xff]
    %v346 = vld [vmem:[#allocation7 + $0x228] sm:$0xff]
    %v347 = vld [vmem:[#allocation7 + $0x230] sm:$0xff]
    %v348 = vld [vmem:[#allocation7 + $0x238] sm:$0xff]
    %v349 = vld [vmem:[#allocation7 + $0x240] sm:$0xff]
    %v350 = vld [vmem:[#allocation7 + $0x248] sm:$0xff]
    %v351 = vld [vmem:[#allocation7 + $0x250] sm:$0xff]
    %v352 = vld [vmem:[#allocation7 + $0x258] sm:$0xff]
    %v353 = vld [vmem:[#allocation7 + $0x260] sm:$0xff]
    %v354 = vld [vmem:[#allocation7 + $0x268] sm:$0xff]
    %v355 = vld [vmem:[#allocation7 + $0x270] sm:$0xff]
    %v356 = vld [vmem:[#allocation7 + $0x278] sm:$0xff]
    %v357 = vld [vmem:[#allocation7 + $0x280] sm:$0xff]
    %v358 = vld [vmem:[#allocation7 + $0x288] sm:$0xff]
    %v359 = vld [vmem:[#allocation7 + $0x290] sm:$0xff]
    %v360 = vld [vmem:[#allocation7 + $0x298] sm:$0xff]
    %v361 = vld [vmem:[#allocation7 + $0x2a0] sm:$0xff]
    %v362 = vld [vmem:[#allocation7 + $0x2a8] sm:$0xff]
    %v363 = vld [vmem:[#allocation7 + $0x2b0] sm:$0xff]
    %v364 = vld [vmem:[#allocation7 + $0x2b8] sm:$0xff]
    %v365 = vld [vmem:[#allocation7 + $0x2c0] sm:$0xff]
    %v366 = vld [vmem:[#allocation7 + $0x2c8] sm:$0xff]
    %v367 = vld [vmem:[#allocation7 + $0x2d0] sm:$0xff]
    %v368 = vld [vmem:[#allocation7 + $0x2d8] sm:$0xff]
    %v369 = vld [vmem:[#allocation7 + $0x2e0] sm:$0xff]
    %v370 = vld [vmem:[#allocation7 + $0x2e8] sm:$0xff]
    %v371 = vld [vmem:[#allocation7 + $0x2f0] sm:$0xff]
    %v372 = vld [vmem:[#allocation7 + $0x2f8] sm:$0xff]
    %v373 = vld [vmem:[#allocation7 + $0x300] sm:$0xff]
    %v374 = vld [vmem:[#allocation7 + $0x308] sm:$0xff]
    %v375 = vld [vmem:[#allocation7 + $0x310] sm:$0xff]
    %v376 = vld [vmem:[#allocation7 + $0x318] sm:$0xff]
    %v377 = vld [vmem:[#allocation7 + $0x320] sm:$0xff]
    %v378 = vld [vmem:[#allocation7 + $0x328] sm:$0xff]
    %v379 = vld [vmem:[#allocation7 + $0x330] sm:$0xff]
    %v380 = vld [vmem:[#allocation7 + $0x338] sm:$0xff]
    %v381 = vld [vmem:[#allocation7 + $0x340] sm:$0xff]
    %v382 = vld [vmem:[#allocation7 + $0x348] sm:$0xff]
    %v383 = vld [vmem:[#allocation7 + $0x350] sm:$0xff]
    %v384 = vld [vmem:[#allocation7 + $0x358] sm:$0xff]
    %v385 = vld [vmem:[#allocation7 + $0x360] sm:$0xff]
    %v386 = vld [vmem:[#allocation7 + $0x368] sm:$0xff]
    %v387 = vld [vmem:[#allocation7 + $0x370] sm:$0xff]
    %v388 = vld [vmem:[#allocation7 + $0x378] sm:$0xff]
    %v389 = vld [vmem:[#allocation7 + $0x380] sm:$0xff]
    %v390 = vld [vmem:[#allocation7 + $0x388] sm:$0xff]
    %v391 = vld [vmem:[#allocation7 + $0x390] sm:$0xff]
    %v392 = vld [vmem:[#allocation7 + $0x398] sm:$0xff]
    %v393 = vld [vmem:[#allocation7 + $0x3a0] sm:$0xff]
    %v394 = vld [vmem:[#allocation7 + $0x3a8] sm:$0xff]
    %v395 = vld [vmem:[#allocation7 + $0x3b0] sm:$0xff]
    %v396 = vld [vmem:[#allocation7 + $0x3b8] sm:$0xff]
    %v397 = vld [vmem:[#allocation7 + $0x3c0] sm:$0xff]
    %v398 = vld [vmem:[#allocation7 + $0x3c8] sm:$0xff]
    %v399 = vld [vmem:[#allocation7 + $0x3d0] sm:$0xff]
    %v400 = vld [vmem:[#allocation7 + $0x3d8] sm:$0xff]
    %v401 = vld [vmem:[#allocation7 + $0x3e0] sm:$0xff]
    %v402 = vld [vmem:[#allocation7 + $0x3e8] sm:$0xff]
    %v403 = vld [vmem:[#allocation7 + $0x3f0] sm:$0xff]
    %v404 = vld [vmem:[#allocation7 + $0x3f8] sm:$0xff]
    %v405 = vld [vmem:[%s4] sm:$0xf]
    %v407 = vlaneseq
    %v408 = vshrl.u32 %v407, 7
    %v409 = vsub.s32 0, %v408
    %v410 = vrot.slane %v405, %v409
    %v411 = vlaneseq
    %v412 = vshrl.u32 %v411, 7
    %v413 = vsub.s32 1, %v412
    %v414 = vrot.slane %v405, %v413
    %v415 = vlaneseq
    %v416 = vshrl.u32 %v415, 7
    %v417 = vsub.s32 2, %v416
    %v418 = vrot.slane %v405, %v417
    %v419 = vlaneseq
    %v420 = vshrl.u32 %v419, 7
    %v421 = vsub.s32 3, %v420
    %v422 = vrot.slane %v405, %v421
    %v555 = vunpack.c.l.b16 %v277
    %v556 = vunpack.c.h.b16 %v277
    %v557 = vunpack.c.l.b16 %v278
    %v558 = vunpack.c.h.b16 %v278
    %v559 = vunpack.c.l.b16 %v279
    %v560 = vunpack.c.h.b16 %v279
    %v561 = vunpack.c.l.b16 %v280
    %v562 = vunpack.c.h.b16 %v280
    %v563 = vunpack.c.l.b16 %v281
    %v564 = vunpack.c.h.b16 %v281
    %v565 = vunpack.c.l.b16 %v282
    %v566 = vunpack.c.h.b16 %v282
    %v567 = vunpack.c.l.b16 %v283
    %v568 = vunpack.c.h.b16 %v283
    %v569 = vunpack.c.l.b16 %v284
    %v570 = vunpack.c.h.b16 %v284
    %v571 = vunpack.c.l.b16 %v285
    %v572 = vunpack.c.h.b16 %v285
    %v573 = vunpack.c.l.b16 %v286
    %v574 = vunpack.c.h.b16 %v286
    %v575 = vunpack.c.l.b16 %v287
    %v576 = vunpack.c.h.b16 %v287
    %v577 = vunpack.c.l.b16 %v288
    %v578 = vunpack.c.h.b16 %v288
    %v579 = vunpack.c.l.b16 %v289
    %v580 = vunpack.c.h.b16 %v289
    %v581 = vunpack.c.l.b16 %v290
    %v582 = vunpack.c.h.b16 %v290
    %v583 = vunpack.c.l.b16 %v291
    %v584 = vunpack.c.h.b16 %v291
    %v585 = vunpack.c.l.b16 %v292
    %v586 = vunpack.c.h.b16 %v292
    %v587 = vunpack.c.l.b16 %v293
    %v588 = vunpack.c.h.b16 %v293
    %v589 = vunpack.c.l.b16 %v294
    %v590 = vunpack.c.h.b16 %v294
    %v591 = vunpack.c.l.b16 %v295
    %v592 = vunpack.c.h.b16 %v295
    %v593 = vunpack.c.l.b16 %v296
    %v594 = vunpack.c.h.b16 %v296
    %v595 = vunpack.c.l.b16 %v297
    %v596 = vunpack.c.h.b16 %v297
    %v597 = vunpack.c.l.b16 %v298
    %v598 = vunpack.c.h.b16 %v298
    %v599 = vunpack.c.l.b16 %v299
    %v600 = vunpack.c.h.b16 %v299
    %v601 = vunpack.c.l.b16 %v300
    %v602 = vunpack.c.h.b16 %v300
    %v603 = vunpack.c.l.b16 %v301
    %v604 = vunpack.c.h.b16 %v301
    %v605 = vunpack.c.l.b16 %v302
    %v606 = vunpack.c.h.b16 %v302
    %v607 = vunpack.c.l.b16 %v303
    %v608 = vunpack.c.h.b16 %v303
    %v609 = vunpack.c.l.b16 %v304
    %v610 = vunpack.c.h.b16 %v304
    %v611 = vunpack.c.l.b16 %v305
    %v612 = vunpack.c.h.b16 %v305
    %v613 = vunpack.c.l.b16 %v306
    %v614 = vunpack.c.h.b16 %v306
    %v615 = vunpack.c.l.b16 %v307
    %v616 = vunpack.c.h.b16 %v307
    %v617 = vunpack.c.l.b16 %v308
    %v618 = vunpack.c.h.b16 %v308
    %v619 = vunpack.c.l.b16 %v309
    %v620 = vunpack.c.h.b16 %v309
    %v621 = vunpack.c.l.b16 %v310
    %v622 = vunpack.c.h.b16 %v310
    %v623 = vunpack.c.l.b16 %v311
    %v624 = vunpack.c.h.b16 %v311
    %v625 = vunpack.c.l.b16 %v312
    %v626 = vunpack.c.h.b16 %v312
    %v627 = vunpack.c.l.b16 %v313
    %v628 = vunpack.c.h.b16 %v313
    %v629 = vunpack.c.l.b16 %v314
    %v630 = vunpack.c.h.b16 %v314
    %v631 = vunpack.c.l.b16 %v315
    %v632 = vunpack.c.h.b16 %v315
    %v633 = vunpack.c.l.b16 %v316
    %v634 = vunpack.c.h.b16 %v316
    %v635 = vunpack.c.l.b16 %v317
    %v636 = vunpack.c.h.b16 %v317
    %v637 = vunpack.c.l.b16 %v318
    %v638 = vunpack.c.h.b16 %v318
    %v639 = vunpack.c.l.b16 %v319
    %v640 = vunpack.c.h.b16 %v319
    %v641 = vunpack.c.l.b16 %v320
    %v642 = vunpack.c.h.b16 %v320
    %v643 = vunpack.c.l.b16 %v321
    %v644 = vunpack.c.h.b16 %v321
    %v645 = vunpack.c.l.b16 %v322
    %v646 = vunpack.c.h.b16 %v322
    %v647 = vunpack.c.l.b16 %v323
    %v648 = vunpack.c.h.b16 %v323
    %v649 = vunpack.c.l.b16 %v324
    %v650 = vunpack.c.h.b16 %v324
    %v651 = vunpack.c.l.b16 %v325
    %v652 = vunpack.c.h.b16 %v325
    %v653 = vunpack.c.l.b16 %v326
    %v654 = vunpack.c.h.b16 %v326
    %v655 = vunpack.c.l.b16 %v327
    %v656 = vunpack.c.h.b16 %v327
    %v657 = vunpack.c.l.b16 %v328
    %v658 = vunpack.c.h.b16 %v328
    %v659 = vunpack.c.l.b16 %v329
    %v660 = vunpack.c.h.b16 %v329
    %v661 = vunpack.c.l.b16 %v330
    %v662 = vunpack.c.h.b16 %v330
    %v663 = vunpack.c.l.b16 %v331
    %v664 = vunpack.c.h.b16 %v331
    %v665 = vunpack.c.l.b16 %v332
    %v666 = vunpack.c.h.b16 %v332
    %v667 = vunpack.c.l.b16 %v333
    %v668 = vunpack.c.h.b16 %v333
    %v669 = vunpack.c.l.b16 %v334
    %v670 = vunpack.c.h.b16 %v334
    %v671 = vunpack.c.l.b16 %v335
    %v672 = vunpack.c.h.b16 %v335
    %v673 = vunpack.c.l.b16 %v336
    %v674 = vunpack.c.h.b16 %v336
    %v675 = vunpack.c.l.b16 %v337
    %v676 = vunpack.c.h.b16 %v337
    %v677 = vunpack.c.l.b16 %v338
    %v678 = vunpack.c.h.b16 %v338
    %v679 = vunpack.c.l.b16 %v339
    %v680 = vunpack.c.h.b16 %v339
    %v681 = vunpack.c.l.b16 %v340
    %v682 = vunpack.c.h.b16 %v340
    %v683 = vunpack.c.l.b16 %v341
    %v684 = vunpack.c.h.b16 %v341
    %v685 = vunpack.c.l.b16 %v342
    %v686 = vunpack.c.h.b16 %v342
    %v687 = vunpack.c.l.b16 %v343
    %v688 = vunpack.c.h.b16 %v343
    %v689 = vunpack.c.l.b16 %v344
    %v690 = vunpack.c.h.b16 %v344
    %v691 = vunpack.c.l.b16 %v345
    %v692 = vunpack.c.h.b16 %v345
    %v693 = vunpack.c.l.b16 %v346
    %v694 = vunpack.c.h.b16 %v346
    %v695 = vunpack.c.l.b16 %v347
    %v696 = vunpack.c.h.b16 %v347
    %v697 = vunpack.c.l.b16 %v348
    %v698 = vunpack.c.h.b16 %v348
    %v699 = vunpack.c.l.b16 %v349
    %v700 = vunpack.c.h.b16 %v349
    %v701 = vunpack.c.l.b16 %v350
    %v702 = vunpack.c.h.b16 %v350
    %v703 = vunpack.c.l.b16 %v351
    %v704 = vunpack.c.h.b16 %v351
    %v705 = vunpack.c.l.b16 %v352
    %v706 = vunpack.c.h.b16 %v352
    %v707 = vunpack.c.l.b16 %v353
    %v708 = vunpack.c.h.b16 %v353
    %v709 = vunpack.c.l.b16 %v354
    %v710 = vunpack.c.h.b16 %v354
    %v711 = vunpack.c.l.b16 %v355
    %v712 = vunpack.c.h.b16 %v355
    %v713 = vunpack.c.l.b16 %v356
    %v714 = vunpack.c.h.b16 %v356
    %v715 = vunpack.c.l.b16 %v357
    %v716 = vunpack.c.h.b16 %v357
    %v717 = vunpack.c.l.b16 %v358
    %v718 = vunpack.c.h.b16 %v358
    %v719 = vunpack.c.l.b16 %v359
    %v720 = vunpack.c.h.b16 %v359
    %v721 = vunpack.c.l.b16 %v360
    %v722 = vunpack.c.h.b16 %v360
    %v723 = vunpack.c.l.b16 %v361
    %v724 = vunpack.c.h.b16 %v361
    %v725 = vunpack.c.l.b16 %v362
    %v726 = vunpack.c.h.b16 %v362
    %v727 = vunpack.c.l.b16 %v363
    %v728 = vunpack.c.h.b16 %v363
    %v729 = vunpack.c.l.b16 %v364
    %v730 = vunpack.c.h.b16 %v364
    %v731 = vunpack.c.l.b16 %v365
    %v732 = vunpack.c.h.b16 %v365
    %v733 = vunpack.c.l.b16 %v366
    %v734 = vunpack.c.h.b16 %v366
    %v735 = vunpack.c.l.b16 %v367
    %v736 = vunpack.c.h.b16 %v367
    %v737 = vunpack.c.l.b16 %v368
    %v738 = vunpack.c.h.b16 %v368
    %v739 = vunpack.c.l.b16 %v369
    %v740 = vunpack.c.h.b16 %v369
    %v741 = vunpack.c.l.b16 %v370
    %v742 = vunpack.c.h.b16 %v370
    %v743 = vunpack.c.l.b16 %v371
    %v744 = vunpack.c.h.b16 %v371
    %v745 = vunpack.c.l.b16 %v372
    %v746 = vunpack.c.h.b16 %v372
    %v747 = vunpack.c.l.b16 %v373
    %v748 = vunpack.c.h.b16 %v373
    %v749 = vunpack.c.l.b16 %v374
    %v750 = vunpack.c.h.b16 %v374
    %v751 = vunpack.c.l.b16 %v375
    %v752 = vunpack.c.h.b16 %v375
    %v753 = vunpack.c.l.b16 %v376
    %v754 = vunpack.c.h.b16 %v376
    %v755 = vunpack.c.l.b16 %v377
    %v756 = vunpack.c.h.b16 %v377
    %v757 = vunpack.c.l.b16 %v378
    %v758 = vunpack.c.h.b16 %v378
    %v759 = vunpack.c.l.b16 %v379
    %v760 = vunpack.c.h.b16 %v379
    %v761 = vunpack.c.l.b16 %v380
    %v762 = vunpack.c.h.b16 %v380
    %v763 = vunpack.c.l.b16 %v381
    %v764 = vunpack.c.h.b16 %v381
    %v765 = vunpack.c.l.b16 %v382
    %v766 = vunpack.c.h.b16 %v382
    %v767 = vunpack.c.l.b16 %v383
    %v768 = vunpack.c.h.b16 %v383
    %v769 = vunpack.c.l.b16 %v384
    %v770 = vunpack.c.h.b16 %v384
    %v771 = vunpack.c.l.b16 %v385
    %v772 = vunpack.c.h.b16 %v385
    %v773 = vunpack.c.l.b16 %v386
    %v774 = vunpack.c.h.b16 %v386
    %v775 = vunpack.c.l.b16 %v387
    %v776 = vunpack.c.h.b16 %v387
    %v777 = vunpack.c.l.b16 %v388
    %v778 = vunpack.c.h.b16 %v388
    %v779 = vunpack.c.l.b16 %v389
    %v780 = vunpack.c.h.b16 %v389
    %v781 = vunpack.c.l.b16 %v390
    %v782 = vunpack.c.h.b16 %v390
    %v783 = vunpack.c.l.b16 %v391
    %v784 = vunpack.c.h.b16 %v391
    %v785 = vunpack.c.l.b16 %v392
    %v786 = vunpack.c.h.b16 %v392
    %v787 = vunpack.c.l.b16 %v393
    %v788 = vunpack.c.h.b16 %v393
    %v789 = vunpack.c.l.b16 %v394
    %v790 = vunpack.c.h.b16 %v394
    %v791 = vunpack.c.l.b16 %v395
    %v792 = vunpack.c.h.b16 %v395
    %v793 = vunpack.c.l.b16 %v396
    %v794 = vunpack.c.h.b16 %v396
    %v795 = vunpack.c.l.b16 %v397
    %v796 = vunpack.c.h.b16 %v397
    %v797 = vunpack.c.l.b16 %v398
    %v798 = vunpack.c.h.b16 %v398
    %v799 = vunpack.c.l.b16 %v399
    %v800 = vunpack.c.h.b16 %v399
    %v801 = vunpack.c.l.b16 %v400
    %v802 = vunpack.c.h.b16 %v400
    %v803 = vunpack.c.l.b16 %v401
    %v804 = vunpack.c.h.b16 %v401
    %v805 = vunpack.c.l.b16 %v402
    %v806 = vunpack.c.h.b16 %v402
    %v807 = vunpack.c.l.b16 %v403
    %v808 = vunpack.c.h.b16 %v403
    %v809 = vunpack.c.l.b16 %v404
    %v810 = vunpack.c.h.b16 %v404
    %v811 = vpack.c.b16 %v559, %v555
    %v812 = vpack.c.b16 %v560, %v556
    %v813 = vpack.c.b16 %v561, %v557
    %v814 = vpack.c.b16 %v562, %v558
    %v815 = vpack.c.b16 %v567, %v563
    %v816 = vpack.c.b16 %v568, %v564
    %v817 = vpack.c.b16 %v569, %v565
    %v818 = vpack.c.b16 %v570, %v566
    %v819 = vpack.c.b16 %v575, %v571
    %v820 = vpack.c.b16 %v576, %v572
    %v821 = vpack.c.b16 %v577, %v573
    %v822 = vpack.c.b16 %v578, %v574
    %v823 = vpack.c.b16 %v583, %v579
    %v824 = vpack.c.b16 %v584, %v580
    %v825 = vpack.c.b16 %v585, %v581
    %v826 = vpack.c.b16 %v586, %v582
    %v827 = vpack.c.b16 %v591, %v587
    %v828 = vpack.c.b16 %v592, %v588
    %v829 = vpack.c.b16 %v593, %v589
    %v830 = vpack.c.b16 %v594, %v590
    %v831 = vpack.c.b16 %v599, %v595
    %v832 = vpack.c.b16 %v600, %v596
    %v833 = vpack.c.b16 %v601, %v597
    %v834 = vpack.c.b16 %v602, %v598
    %v835 = vpack.c.b16 %v607, %v603
    %v836 = vpack.c.b16 %v608, %v604
    %v837 = vpack.c.b16 %v609, %v605
    %v838 = vpack.c.b16 %v610, %v606
    %v839 = vpack.c.b16 %v615, %v611
    %v840 = vpack.c.b16 %v616, %v612
    %v841 = vpack.c.b16 %v617, %v613
    %v842 = vpack.c.b16 %v618, %v614
    %v843 = vpack.c.b16 %v623, %v619
    %v844 = vpack.c.b16 %v624, %v620
    %v845 = vpack.c.b16 %v625, %v621
    %v846 = vpack.c.b16 %v626, %v622
    %v847 = vpack.c.b16 %v631, %v627
    %v848 = vpack.c.b16 %v632, %v628
    %v849 = vpack.c.b16 %v633, %v629
    %v850 = vpack.c.b16 %v634, %v630
    %v851 = vpack.c.b16 %v639, %v635
    %v852 = vpack.c.b16 %v640, %v636
    %v853 = vpack.c.b16 %v641, %v637
    %v854 = vpack.c.b16 %v642, %v638
    %v855 = vpack.c.b16 %v647, %v643
    %v856 = vpack.c.b16 %v648, %v644
    %v857 = vpack.c.b16 %v649, %v645
    %v858 = vpack.c.b16 %v650, %v646
    %v859 = vpack.c.b16 %v655, %v651
    %v860 = vpack.c.b16 %v656, %v652
    %v861 = vpack.c.b16 %v657, %v653
    %v862 = vpack.c.b16 %v658, %v654
    %v863 = vpack.c.b16 %v663, %v659
    %v864 = vpack.c.b16 %v664, %v660
    %v865 = vpack.c.b16 %v665, %v661
    %v866 = vpack.c.b16 %v666, %v662
    %v867 = vpack.c.b16 %v671, %v667
    %v868 = vpack.c.b16 %v672, %v668
    %v869 = vpack.c.b16 %v673, %v669
    %v870 = vpack.c.b16 %v674, %v670
    %v871 = vpack.c.b16 %v679, %v675
    %v872 = vpack.c.b16 %v680, %v676
    %v873 = vpack.c.b16 %v681, %v677
    %v874 = vpack.c.b16 %v682, %v678
    %v875 = vpack.c.b16 %v687, %v683
    %v876 = vpack.c.b16 %v688, %v684
    %v877 = vpack.c.b16 %v689, %v685
    %v878 = vpack.c.b16 %v690, %v686
    %v879 = vpack.c.b16 %v695, %v691
    %v880 = vpack.c.b16 %v696, %v692
    %v881 = vpack.c.b16 %v697, %v693
    %v882 = vpack.c.b16 %v698, %v694
    %v883 = vpack.c.b16 %v703, %v699
    %v884 = vpack.c.b16 %v704, %v700
    %v885 = vpack.c.b16 %v705, %v701
    %v886 = vpack.c.b16 %v706, %v702
    %v887 = vpack.c.b16 %v711, %v707
    %v888 = vpack.c.b16 %v712, %v708
    %v889 = vpack.c.b16 %v713, %v709
    %v890 = vpack.c.b16 %v714, %v710
    %v891 = vpack.c.b16 %v719, %v715
    %v892 = vpack.c.b16 %v720, %v716
    %v893 = vpack.c.b16 %v721, %v717
    %v894 = vpack.c.b16 %v722, %v718
    %v895 = vpack.c.b16 %v727, %v723
    %v896 = vpack.c.b16 %v728, %v724
    %v897 = vpack.c.b16 %v729, %v725
    %v898 = vpack.c.b16 %v730, %v726
    %v899 = vpack.c.b16 %v735, %v731
    %v900 = vpack.c.b16 %v736, %v732
    %v901 = vpack.c.b16 %v737, %v733
    %v902 = vpack.c.b16 %v738, %v734
    %v903 = vpack.c.b16 %v743, %v739
    %v904 = vpack.c.b16 %v744, %v740
    %v905 = vpack.c.b16 %v745, %v741
    %v906 = vpack.c.b16 %v746, %v742
    %v907 = vpack.c.b16 %v751, %v747
    %v908 = vpack.c.b16 %v752, %v748
    %v909 = vpack.c.b16 %v753, %v749
    %v910 = vpack.c.b16 %v754, %v750
    %v911 = vpack.c.b16 %v759, %v755
    %v912 = vpack.c.b16 %v760, %v756
    %v913 = vpack.c.b16 %v761, %v757
    %v914 = vpack.c.b16 %v762, %v758
    %v915 = vpack.c.b16 %v767, %v763
    %v916 = vpack.c.b16 %v768, %v764
    %v917 = vpack.c.b16 %v769, %v765
    %v918 = vpack.c.b16 %v770, %v766
    %v919 = vpack.c.b16 %v775, %v771
    %v920 = vpack.c.b16 %v776, %v772
    %v921 = vpack.c.b16 %v777, %v773
    %v922 = vpack.c.b16 %v778, %v774
    %v923 = vpack.c.b16 %v783, %v779
    %v924 = vpack.c.b16 %v784, %v780
    %v925 = vpack.c.b16 %v785, %v781
    %v926 = vpack.c.b16 %v786, %v782
    %v927 = vpack.c.b16 %v791, %v787
    %v928 = vpack.c.b16 %v792, %v788
    %v929 = vpack.c.b16 %v793, %v789
    %v930 = vpack.c.b16 %v794, %v790
    %v931 = vpack.c.b16 %v799, %v795
    %v932 = vpack.c.b16 %v800, %v796
    %v933 = vpack.c.b16 %v801, %v797
    %v934 = vpack.c.b16 %v802, %v798
    %v935 = vpack.c.b16 %v807, %v803
    %v936 = vpack.c.b16 %v808, %v804
    %v937 = vpack.c.b16 %v809, %v805
    %v938 = vpack.c.b16 %v810, %v806
    %1067 = vmatprep.subr.bf16.mxu0 %v812
    %1068 = vmatpush1.bf16.msra.mxu0 %v811
    %1069 = vmatprep.subr.bf16.mxu0 %v816
    %1070 = vmatpush1.bf16.msra.mxu0 %v815
    %1071 = vmatprep.subr.bf16.mxu0 %v820
    %1072 = vmatpush1.bf16.msra.mxu0 %v819
    %1073 = vmatprep.subr.bf16.mxu0 %v824
    %1074 = vmatpush1.bf16.msra.mxu0 %v823
    %1075 = vmatprep.subr.bf16.mxu0 %v828
    %1076 = vmatpush1.bf16.msra.mxu0 %v827
    %1077 = vmatprep.subr.bf16.mxu0 %v832
    %1078 = vmatpush1.bf16.msra.mxu0 %v831
    %1079 = vmatprep.subr.bf16.mxu0 %v836
    %1080 = vmatpush1.bf16.msra.mxu0 %v835
    %1081 = vmatprep.subr.bf16.mxu0 %v840
    %1082 = vmatpush1.bf16.msra.mxu0 %v839
    %1083 = vmatprep.subr.bf16.mxu0 %v844
    %1084 = vmatpush1.bf16.msra.mxu0 %v843
    %1085 = vmatprep.subr.bf16.mxu0 %v848
    %1086 = vmatpush1.bf16.msra.mxu0 %v847
    %1087 = vmatprep.subr.bf16.mxu0 %v852
    %1088 = vmatpush1.bf16.msra.mxu0 %v851
    %1089 = vmatprep.subr.bf16.mxu0 %v856
    %1090 = vmatpush1.bf16.msra.mxu0 %v855
    %1091 = vmatprep.subr.bf16.mxu0 %v860
    %1092 = vmatpush1.bf16.msra.mxu0 %v859
    %1093 = vmatprep.subr.bf16.mxu0 %v864
    %1094 = vmatpush1.bf16.msra.mxu0 %v863
    %1095 = vmatprep.subr.bf16.mxu0 %v868
    %1096 = vmatpush1.bf16.msra.mxu0 %v867
    %1097 = vmatprep.subr.bf16.mxu0 %v872
    %1098 = vmatpush1.bf16.msra.mxu0 %v871
    %1099 = vmatprep.mubr.bf16.mxu0 %v274
    %1100 = vmatmul.mubr.bf16.gmra.mrb[0].mxu0 %v273
    %v1101 = vpop.f32.mrb[0].mxu0
    %v1102 = vadd.f32 %v410, %v1101
    %v1103 = vpop.f32.mrb[0].mxu0
    %v1104 = vadd.f32 %v414, %v1103
    %v1105 = vpop.f32.mrb[0].mxu0
    %v1106 = vadd.f32 %v410, %v1105
    %v1107 = vpop.f32.mrb[0].mxu0
    %v1108 = vadd.f32 %v414, %v1107
    %1109 = vdwg.mxu0
    %1110 = vmatprep.subr.bf16.mxu0 %v876
    %1111 = vmatpush1.bf16.msra.mxu0 %v875
    %1112 = vmatprep.subr.bf16.mxu0 %v880
    %1113 = vmatpush1.bf16.msra.mxu0 %v879
    %1114 = vmatprep.subr.bf16.mxu0 %v884
    %1115 = vmatpush1.bf16.msra.mxu0 %v883
    %1116 = vmatprep.subr.bf16.mxu0 %v888
    %1117 = vmatpush1.bf16.msra.mxu0 %v887
    %1118 = vmatprep.subr.bf16.mxu0 %v892
    %1119 = vmatpush1.bf16.msra.mxu0 %v891
    %1120 = vmatprep.subr.bf16.mxu0 %v896
    %1121 = vmatpush1.bf16.msra.mxu0 %v895
    %1122 = vmatprep.subr.bf16.mxu0 %v900
    %1123 = vmatpush1.bf16.msra.mxu0 %v899
    %1124 = vmatprep.subr.bf16.mxu0 %v904
    %1125 = vmatpush1.bf16.msra.mxu0 %v903
    %1126 = vmatprep.subr.bf16.mxu0 %v908
    %1127 = vmatpush1.bf16.msra.mxu0 %v907
    %1128 = vmatprep.subr.bf16.mxu0 %v912
    %1129 = vmatpush1.bf16.msra.mxu0 %v911
    %1130 = vmatprep.subr.bf16.mxu0 %v916
    %1131 = vmatpush1.bf16.msra.mxu0 %v915
    %1132 = vmatprep.subr.bf16.mxu0 %v920
    %1133 = vmatpush1.bf16.msra.mxu0 %v919
    %1134 = vmatprep.subr.bf16.mxu0 %v924
    %1135 = vmatpush1.bf16.msra.mxu0 %v923
    %1136 = vmatprep.subr.bf16.mxu0 %v928
    %1137 = vmatpush1.bf16.msra.mxu0 %v927
    %1138 = vmatprep.subr.bf16.mxu0 %v932
    %1139 = vmatpush1.bf16.msra.mxu0 %v931
    %1140 = vmatprep.subr.bf16.mxu0 %v936
    %1141 = vmatpush1.bf16.msra.mxu0 %v935
    %1142 = vmatprep.mubr.bf16.mxu0 %v276
    %1143 = vmatmul.mubr.bf16.gmra.mrb[0].mxu0 %v275
    %v1144 = vpop.f32.mrb[0].mxu0
    %v1145 = vadd.f32 %v1102, %v1144
    %v1146 = vpop.f32.mrb[0].mxu0
    %v1147 = vadd.f32 %v1104, %v1146
    %v1148 = vpop.f32.mrb[0].mxu0
    %v1149 = vadd.f32 %v1106, %v1148
    %v1150 = vpop.f32.mrb[0].mxu0
    %v1151 = vadd.f32 %v1108, %v1150
    %1152 = vdwg.mxu0
    %1153 = vmatprep.subr.bf16.mxu0 %v814
    %1154 = vmatpush1.bf16.msra.mxu0 %v813
    %1155 = vmatprep.subr.bf16.mxu0 %v818
    %1156 = vmatpush1.bf16.msra.mxu0 %v817
    %1157 = vmatprep.subr.bf16.mxu0 %v822
    %1158 = vmatpush1.bf16.msra.mxu0 %v821
    %1159 = vmatprep.subr.bf16.mxu0 %v826
    %1160 = vmatpush1.bf16.msra.mxu0 %v825
    %1161 = vmatprep.subr.bf16.mxu0 %v830
    %1162 = vmatpush1.bf16.msra.mxu0 %v829
    %1163 = vmatprep.subr.bf16.mxu0 %v834
    %1164 = vmatpush1.bf16.msra.mxu0 %v833
    %1165 = vmatprep.subr.bf16.mxu0 %v838
    %1166 = vmatpush1.bf16.msra.mxu0 %v837
    %1167 = vmatprep.subr.bf16.mxu0 %v842
    %1168 = vmatpush1.bf16.msra.mxu0 %v841
    %1169 = vmatprep.subr.bf16.mxu0 %v846
    %1170 = vmatpush1.bf16.msra.mxu0 %v845
    %1171 = vmatprep.subr.bf16.mxu0 %v850
    %1172 = vmatpush1.bf16.msra.mxu0 %v849
    %1173 = vmatprep.subr.bf16.mxu0 %v854
    %1174 = vmatpush1.bf16.msra.mxu0 %v853
    %1175 = vmatprep.subr.bf16.mxu0 %v858
    %1176 = vmatpush1.bf16.msra.mxu0 %v857
    %1177 = vmatprep.subr.bf16.mxu0 %v862
    %1178 = vmatpush1.bf16.msra.mxu0 %v861
    %1179 = vmatprep.subr.bf16.mxu0 %v866
    %1180 = vmatpush1.bf16.msra.mxu0 %v865
    %1181 = vmatprep.subr.bf16.mxu0 %v870
    %1182 = vmatpush1.bf16.msra.mxu0 %v869
    %1183 = vmatprep.subr.bf16.mxu0 %v874
    %1184 = vmatpush1.bf16.msra.mxu0 %v873
    %1185 = vmatprep.mubr.bf16.mxu0 %v274
    %1186 = vmatmul.mubr.bf16.gmra.mrb[0].mxu0 %v273
    %v1187 = vpop.f32.mrb[0].mxu0
    %v1188 = vadd.f32 %v418, %v1187
    %v1189 = vpop.f32.mrb[0].mxu0
    %v1190 = vadd.f32 %v422, %v1189
    %v1191 = vpop.f32.mrb[0].mxu0
    %v1192 = vadd.f32 %v418, %v1191
    %v1193 = vpop.f32.mrb[0].mxu0
    %v1194 = vadd.f32 %v422, %v1193
    %1195 = vdwg.mxu0
    %1196 = vmatprep.subr.bf16.mxu0 %v878
    %1197 = vmatpush1.bf16.msra.mxu0 %v877
    %1198 = vmatprep.subr.bf16.mxu0 %v882
    %1199 = vmatpush1.bf16.msra.mxu0 %v881
    %1200 = vmatprep.subr.bf16.mxu0 %v886
    %1201 = vmatpush1.bf16.msra.mxu0 %v885
    %1202 = vmatprep.subr.bf16.mxu0 %v890
    %1203 = vmatpush1.bf16.msra.mxu0 %v889
    %1204 = vmatprep.subr.bf16.mxu0 %v894
    %1205 = vmatpush1.bf16.msra.mxu0 %v893
    %1206 = vmatprep.subr.bf16.mxu0 %v898
    %1207 = vmatpush1.bf16.msra.mxu0 %v897
    %1208 = vmatprep.subr.bf16.mxu0 %v902
    %1209 = vmatpush1.bf16.msra.mxu0 %v901
    %1210 = vmatprep.subr.bf16.mxu0 %v906
    %1211 = vmatpush1.bf16.msra.mxu0 %v905
    %1212 = vmatprep.subr.bf16.mxu0 %v910
    %1213 = vmatpush1.bf16.msra.mxu0 %v909
    %1214 = vmatprep.subr.bf16.mxu0 %v914
    %1215 = vmatpush1.bf16.msra.mxu0 %v913
    %1216 = vmatprep.subr.bf16.mxu0 %v918
    %1217 = vmatpush1.bf16.msra.mxu0 %v917
    %1218 = vmatprep.subr.bf16.mxu0 %v922
    %1219 = vmatpush1.bf16.msra.mxu0 %v921
    %1220 = vmatprep.subr.bf16.mxu0 %v926
    %1221 = vmatpush1.bf16.msra.mxu0 %v925
    %1222 = vmatprep.subr.bf16.mxu0 %v930
    %1223 = vmatpush1.bf16.msra.mxu0 %v929
    %1224 = vmatprep.subr.bf16.mxu0 %v934
    %1225 = vmatpush1.bf16.msra.mxu0 %v933
    %1226 = vmatprep.subr.bf16.mxu0 %v938
    %1227 = vmatpush1.bf16.msra.mxu0 %v937
    %1228 = vmatprep.mubr.bf16.mxu0 %v276
    %1229 = vmatmul.mubr.bf16.gmra.mrb[0].mxu0 %v275
    %v1230 = vpop.f32.mrb[0].mxu0
    %v1231 = vadd.f32 %v1188, %v1230
    %v1232 = vpop.f32.mrb[0].mxu0
    %v1233 = vadd.f32 %v1190, %v1232
    %v1234 = vpop.f32.mrb[0].mxu0
    %v1235 = vadd.f32 %v1192, %v1234
    %v1236 = vpop.f32.mrb[0].mxu0
    %v1237 = vadd.f32 %v1194, %v1236
    %1238 = vdwg.mxu0
    %v1239 = vmax.f32 %v1145, 0.0
    %v1240 = vmax.f32 %v1147, 0.0
    %v1241 = vmax.f32 %v1231, 0.0
    %v1242 = vmax.f32 %v1233, 0.0
    %v1243 = vmax.f32 %v1149, 0.0
    %v1244 = vmax.f32 %v1151, 0.0
    %v1245 = vmax.f32 %v1235, 0.0
    %v1246 = vmax.f32 %v1237, 0.0
    %v1247 = vpack.c.bf16 %v1243, %v1239
    %v1248 = vpack.c.bf16 %v1244, %v1240
    %v1249 = vpack.c.bf16 %v1245, %v1241
    %v1250 = vpack.c.bf16 %v1246, %v1242
    %v1251 = vld [vmem:[#allocation8] sm:$0xff]
    %v1252 = vld [vmem:[#allocation8 + $0x8] sm:$0xff]
    %v1253 = vld [vmem:[#allocation8 + $0x10] sm:$0xff]
    %v1254 = vld [vmem:[#allocation8 + $0x18] sm:$0xff]
    %v1255 = vld [vmem:[#allocation8 + $0x20] sm:$0xff]
    %v1256 = vld [vmem:[#allocation8 + $0x28] sm:$0xff]
    %v1257 = vld [vmem:[#allocation8 + $0x30] sm:$0xff]
    %v1258 = vld [vmem:[#allocation8 + $0x38] sm:$0xff]
    %v1259 = vld [vmem:[#allocation8 + $0x40] sm:$0xff]
    %v1260 = vld [vmem:[#allocation8 + $0x48] sm:$0xff]
    %v1261 = vld [vmem:[#allocation8 + $0x50] sm:$0xff]
    %v1262 = vld [vmem:[#allocation8 + $0x58] sm:$0xff]
    %v1263 = vld [vmem:[#allocation8 + $0x60] sm:$0xff]
    %v1264 = vld [vmem:[#allocation8 + $0x68] sm:$0xff]
    %v1265 = vld [vmem:[#allocation8 + $0x70] sm:$0xff]
    %v1266 = vld [vmem:[#allocation8 + $0x78] sm:$0xff]
    %v1267 = vld [vmem:[#allocation8 + $0x80] sm:$0xff]
    %v1268 = vld [vmem:[#allocation8 + $0x88] sm:$0xff]
    %v1269 = vld [vmem:[#allocation8 + $0x90] sm:$0xff]
    %v1270 = vld [vmem:[#allocation8 + $0x98] sm:$0xff]
    %v1271 = vld [vmem:[#allocation8 + $0xa0] sm:$0xff]
    %v1272 = vld [vmem:[#allocation8 + $0xa8] sm:$0xff]
    %v1273 = vld [vmem:[#allocation8 + $0xb0] sm:$0xff]
    %v1274 = vld [vmem:[#allocation8 + $0xb8] sm:$0xff]
    %v1275 = vld [vmem:[#allocation8 + $0xc0] sm:$0xff]
    %v1276 = vld [vmem:[#allocation8 + $0xc8] sm:$0xff]
    %v1277 = vld [vmem:[#allocation8 + $0xd0] sm:$0xff]
    %v1278 = vld [vmem:[#allocation8 + $0xd8] sm:$0xff]
    %v1279 = vld [vmem:[#allocation8 + $0xe0] sm:$0xff]
    %v1280 = vld [vmem:[#allocation8 + $0xe8] sm:$0xff]
    %v1281 = vld [vmem:[#allocation8 + $0xf0] sm:$0xff]
    %v1282 = vld [vmem:[#allocation8 + $0xf8] sm:$0xff]
    %v1283 = vld [vmem:[#allocation8 + $0x100] sm:$0xff]
    %v1284 = vld [vmem:[#allocation8 + $0x108] sm:$0xff]
    %v1285 = vld [vmem:[#allocation8 + $0x110] sm:$0xff]
    %v1286 = vld [vmem:[#allocation8 + $0x118] sm:$0xff]
    %v1287 = vld [vmem:[#allocation8 + $0x120] sm:$0xff]
    %v1288 = vld [vmem:[#allocation8 + $0x128] sm:$0xff]
    %v1289 = vld [vmem:[#allocation8 + $0x130] sm:$0xff]
    %v1290 = vld [vmem:[#allocation8 + $0x138] sm:$0xff]
    %v1291 = vld [vmem:[#allocation8 + $0x140] sm:$0xff]
    %v1292 = vld [vmem:[#allocation8 + $0x148] sm:$0xff]
    %v1293 = vld [vmem:[#allocation8 + $0x150] sm:$0xff]
    %v1294 = vld [vmem:[#allocation8 + $0x158] sm:$0xff]
    %v1295 = vld [vmem:[#allocation8 + $0x160] sm:$0xff]
    %v1296 = vld [vmem:[#allocation8 + $0x168] sm:$0xff]
    %v1297 = vld [vmem:[#allocation8 + $0x170] sm:$0xff]
    %v1298 = vld [vmem:[#allocation8 + $0x178] sm:$0xff]
    %v1299 = vld [vmem:[#allocation8 + $0x180] sm:$0xff]
    %v1300 = vld [vmem:[#allocation8 + $0x188] sm:$0xff]
    %v1301 = vld [vmem:[#allocation8 + $0x190] sm:$0xff]
    %v1302 = vld [vmem:[#allocation8 + $0x198] sm:$0xff]
    %v1303 = vld [vmem:[#allocation8 + $0x1a0] sm:$0xff]
    %v1304 = vld [vmem:[#allocation8 + $0x1a8] sm:$0xff]
    %v1305 = vld [vmem:[#allocation8 + $0x1b0] sm:$0xff]
    %v1306 = vld [vmem:[#allocation8 + $0x1b8] sm:$0xff]
    %v1307 = vld [vmem:[#allocation8 + $0x1c0] sm:$0xff]
    %v1308 = vld [vmem:[#allocation8 + $0x1c8] sm:$0xff]
    %v1309 = vld [vmem:[#allocation8 + $0x1d0] sm:$0xff]
    %v1310 = vld [vmem:[#allocation8 + $0x1d8] sm:$0xff]
    %v1311 = vld [vmem:[#allocation8 + $0x1e0] sm:$0xff]
    %v1312 = vld [vmem:[#allocation8 + $0x1e8] sm:$0xff]
    %v1313 = vld [vmem:[#allocation8 + $0x1f0] sm:$0xff]
    %v1314 = vld [vmem:[#allocation8 + $0x1f8] sm:$0xff]
    %v1315 = vld [vmem:[#allocation8 + $0x200] sm:$0xff]
    %v1316 = vld [vmem:[#allocation8 + $0x208] sm:$0xff]
    %v1317 = vld [vmem:[#allocation8 + $0x210] sm:$0xff]
    %v1318 = vld [vmem:[#allocation8 + $0x218] sm:$0xff]
    %v1319 = vld [vmem:[#allocation8 + $0x220] sm:$0xff]
    %v1320 = vld [vmem:[#allocation8 + $0x228] sm:$0xff]
    %v1321 = vld [vmem:[#allocation8 + $0x230] sm:$0xff]
    %v1322 = vld [vmem:[#allocation8 + $0x238] sm:$0xff]
    %v1323 = vld [vmem:[#allocation8 + $0x240] sm:$0xff]
    %v1324 = vld [vmem:[#allocation8 + $0x248] sm:$0xff]
    %v1325 = vld [vmem:[#allocation8 + $0x250] sm:$0xff]
    %v1326 = vld [vmem:[#allocation8 + $0x258] sm:$0xff]
    %v1327 = vld [vmem:[#allocation8 + $0x260] sm:$0xff]
    %v1328 = vld [vmem:[#allocation8 + $0x268] sm:$0xff]
    %v1329 = vld [vmem:[#allocation8 + $0x270] sm:$0xff]
    %v1330 = vld [vmem:[#allocation8 + $0x278] sm:$0xff]
    %v1331 = vld [vmem:[#allocation8 + $0x280] sm:$0xff]
    %v1332 = vld [vmem:[#allocation8 + $0x288] sm:$0xff]
    %v1333 = vld [vmem:[#allocation8 + $0x290] sm:$0xff]
    %v1334 = vld [vmem:[#allocation8 + $0x298] sm:$0xff]
    %v1335 = vld [vmem:[#allocation8 + $0x2a0] sm:$0xff]
    %v1336 = vld [vmem:[#allocation8 + $0x2a8] sm:$0xff]
    %v1337 = vld [vmem:[#allocation8 + $0x2b0] sm:$0xff]
    %v1338 = vld [vmem:[#allocation8 + $0x2b8] sm:$0xff]
    %v1339 = vld [vmem:[#allocation8 + $0x2c0] sm:$0xff]
    %v1340 = vld [vmem:[#allocation8 + $0x2c8] sm:$0xff]
    %v1341 = vld [vmem:[#allocation8 + $0x2d0] sm:$0xff]
    %v1342 = vld [vmem:[#allocation8 + $0x2d8] sm:$0xff]
    %v1343 = vld [vmem:[#allocation8 + $0x2e0] sm:$0xff]
    %v1344 = vld [vmem:[#allocation8 + $0x2e8] sm:$0xff]
    %v1345 = vld [vmem:[#allocation8 + $0x2f0] sm:$0xff]
    %v1346 = vld [vmem:[#allocation8 + $0x2f8] sm:$0xff]
    %v1347 = vld [vmem:[#allocation8 + $0x300] sm:$0xff]
    %v1348 = vld [vmem:[#allocation8 + $0x308] sm:$0xff]
    %v1349 = vld [vmem:[#allocation8 + $0x310] sm:$0xff]
    %v1350 = vld [vmem:[#allocation8 + $0x318] sm:$0xff]
    %v1351 = vld [vmem:[#allocation8 + $0x320] sm:$0xff]
    %v1352 = vld [vmem:[#allocation8 + $0x328] sm:$0xff]
    %v1353 = vld [vmem:[#allocation8 + $0x330] sm:$0xff]
    %v1354 = vld [vmem:[#allocation8 + $0x338] sm:$0xff]
    %v1355 = vld [vmem:[#allocation8 + $0x340] sm:$0xff]
    %v1356 = vld [vmem:[#allocation8 + $0x348] sm:$0xff]
    %v1357 = vld [vmem:[#allocation8 + $0x350] sm:$0xff]
    %v1358 = vld [vmem:[#allocation8 + $0x358] sm:$0xff]
    %v1359 = vld [vmem:[#allocation8 + $0x360] sm:$0xff]
    %v1360 = vld [vmem:[#allocation8 + $0x368] sm:$0xff]
    %v1361 = vld [vmem:[#allocation8 + $0x370] sm:$0xff]
    %v1362 = vld [vmem:[#allocation8 + $0x378] sm:$0xff]
    %v1363 = vld [vmem:[#allocation8 + $0x380] sm:$0xff]
    %v1364 = vld [vmem:[#allocation8 + $0x388] sm:$0xff]
    %v1365 = vld [vmem:[#allocation8 + $0x390] sm:$0xff]
    %v1366 = vld [vmem:[#allocation8 + $0x398] sm:$0xff]
    %v1367 = vld [vmem:[#allocation8 + $0x3a0] sm:$0xff]
    %v1368 = vld [vmem:[#allocation8 + $0x3a8] sm:$0xff]
    %v1369 = vld [vmem:[#allocation8 + $0x3b0] sm:$0xff]
    %v1370 = vld [vmem:[#allocation8 + $0x3b8] sm:$0xff]
    %v1371 = vld [vmem:[#allocation8 + $0x3c0] sm:$0xff]
    %v1372 = vld [vmem:[#allocation8 + $0x3c8] sm:$0xff]
    %v1373 = vld [vmem:[#allocation8 + $0x3d0] sm:$0xff]
    %v1374 = vld [vmem:[#allocation8 + $0x3d8] sm:$0xff]
    %v1375 = vld [vmem:[#allocation8 + $0x3e0] sm:$0xff]
    %v1376 = vld [vmem:[#allocation8 + $0x3e8] sm:$0xff]
    %v1377 = vld [vmem:[#allocation8 + $0x3f0] sm:$0xff]
    %v1378 = vld [vmem:[#allocation8 + $0x3f8] sm:$0xff]
    %v1379 = vld [vmem:[%s6] sm:$0xf]
    %v1381 = vlaneseq
    %v1382 = vshrl.u32 %v1381, 7
    %v1383 = vsub.s32 0, %v1382
    %v1384 = vrot.slane %v1379, %v1383
    %v1385 = vlaneseq
    %v1386 = vshrl.u32 %v1385, 7
    %v1387 = vsub.s32 1, %v1386
    %v1388 = vrot.slane %v1379, %v1387
    %v1389 = vlaneseq
    %v1390 = vshrl.u32 %v1389, 7
    %v1391 = vsub.s32 2, %v1390
    %v1392 = vrot.slane %v1379, %v1391
    %v1393 = vlaneseq
    %v1394 = vshrl.u32 %v1393, 7
    %v1395 = vsub.s32 3, %v1394
    %v1396 = vrot.slane %v1379, %v1395
    %v1529 = vunpack.c.l.b16 %v1251
    %v1530 = vunpack.c.h.b16 %v1251
    %v1531 = vunpack.c.l.b16 %v1252
    %v1532 = vunpack.c.h.b16 %v1252
    %v1533 = vunpack.c.l.b16 %v1253
    %v1534 = vunpack.c.h.b16 %v1253
    %v1535 = vunpack.c.l.b16 %v1254
    %v1536 = vunpack.c.h.b16 %v1254
    %v1537 = vunpack.c.l.b16 %v1255
    %v1538 = vunpack.c.h.b16 %v1255
    %v1539 = vunpack.c.l.b16 %v1256
    %v1540 = vunpack.c.h.b16 %v1256
    %v1541 = vunpack.c.l.b16 %v1257
    %v1542 = vunpack.c.h.b16 %v1257
    %v1543 = vunpack.c.l.b16 %v1258
    %v1544 = vunpack.c.h.b16 %v1258
    %v1545 = vunpack.c.l.b16 %v1259
    %v1546 = vunpack.c.h.b16 %v1259
    %v1547 = vunpack.c.l.b16 %v1260
    %v1548 = vunpack.c.h.b16 %v1260
    %v1549 = vunpack.c.l.b16 %v1261
    %v1550 = vunpack.c.h.b16 %v1261
    %v1551 = vunpack.c.l.b16 %v1262
    %v1552 = vunpack.c.h.b16 %v1262
    %v1553 = vunpack.c.l.b16 %v1263
    %v1554 = vunpack.c.h.b16 %v1263
    %v1555 = vunpack.c.l.b16 %v1264
    %v1556 = vunpack.c.h.b16 %v1264
    %v1557 = vunpack.c.l.b16 %v1265
    %v1558 = vunpack.c.h.b16 %v1265
    %v1559 = vunpack.c.l.b16 %v1266
    %v1560 = vunpack.c.h.b16 %v1266
    %v1561 = vunpack.c.l.b16 %v1267
    %v1562 = vunpack.c.h.b16 %v1267
    %v1563 = vunpack.c.l.b16 %v1268
    %v1564 = vunpack.c.h.b16 %v1268
    %v1565 = vunpack.c.l.b16 %v1269
    %v1566 = vunpack.c.h.b16 %v1269
    %v1567 = vunpack.c.l.b16 %v1270
    %v1568 = vunpack.c.h.b16 %v1270
    %v1569 = vunpack.c.l.b16 %v1271
    %v1570 = vunpack.c.h.b16 %v1271
    %v1571 = vunpack.c.l.b16 %v1272
    %v1572 = vunpack.c.h.b16 %v1272
    %v1573 = vunpack.c.l.b16 %v1273
    %v1574 = vunpack.c.h.b16 %v1273
    %v1575 = vunpack.c.l.b16 %v1274
    %v1576 = vunpack.c.h.b16 %v1274
    %v1577 = vunpack.c.l.b16 %v1275
    %v1578 = vunpack.c.h.b16 %v1275
    %v1579 = vunpack.c.l.b16 %v1276
    %v1580 = vunpack.c.h.b16 %v1276
    %v1581 = vunpack.c.l.b16 %v1277
    %v1582 = vunpack.c.h.b16 %v1277
    %v1583 = vunpack.c.l.b16 %v1278
    %v1584 = vunpack.c.h.b16 %v1278
    %v1585 = vunpack.c.l.b16 %v1279
    %v1586 = vunpack.c.h.b16 %v1279
    %v1587 = vunpack.c.l.b16 %v1280
    %v1588 = vunpack.c.h.b16 %v1280
    %v1589 = vunpack.c.l.b16 %v1281
    %v1590 = vunpack.c.h.b16 %v1281
    %v1591 = vunpack.c.l.b16 %v1282
    %v1592 = vunpack.c.h.b16 %v1282
    %v1593 = vunpack.c.l.b16 %v1283
    %v1594 = vunpack.c.h.b16 %v1283
    %v1595 = vunpack.c.l.b16 %v1284
    %v1596 = vunpack.c.h.b16 %v1284
    %v1597 = vunpack.c.l.b16 %v1285
    %v1598 = vunpack.c.h.b16 %v1285
    %v1599 = vunpack.c.l.b16 %v1286
    %v1600 = vunpack.c.h.b16 %v1286
    %v1601 = vunpack.c.l.b16 %v1287
    %v1602 = vunpack.c.h.b16 %v1287
    %v1603 = vunpack.c.l.b16 %v1288
    %v1604 = vunpack.c.h.b16 %v1288
    %v1605 = vunpack.c.l.b16 %v1289
    %v1606 = vunpack.c.h.b16 %v1289
    %v1607 = vunpack.c.l.b16 %v1290
    %v1608 = vunpack.c.h.b16 %v1290
    %v1609 = vunpack.c.l.b16 %v1291
    %v1610 = vunpack.c.h.b16 %v1291
    %v1611 = vunpack.c.l.b16 %v1292
    %v1612 = vunpack.c.h.b16 %v1292
    %v1613 = vunpack.c.l.b16 %v1293
    %v1614 = vunpack.c.h.b16 %v1293
    %v1615 = vunpack.c.l.b16 %v1294
    %v1616 = vunpack.c.h.b16 %v1294
    %v1617 = vunpack.c.l.b16 %v1295
    %v1618 = vunpack.c.h.b16 %v1295
    %v1619 = vunpack.c.l.b16 %v1296
    %v1620 = vunpack.c.h.b16 %v1296
    %v1621 = vunpack.c.l.b16 %v1297
    %v1622 = vunpack.c.h.b16 %v1297
    %v1623 = vunpack.c.l.b16 %v1298
    %v1624 = vunpack.c.h.b16 %v1298
    %v1625 = vunpack.c.l.b16 %v1299
    %v1626 = vunpack.c.h.b16 %v1299
    %v1627 = vunpack.c.l.b16 %v1300
    %v1628 = vunpack.c.h.b16 %v1300
    %v1629 = vunpack.c.l.b16 %v1301
    %v1630 = vunpack.c.h.b16 %v1301
    %v1631 = vunpack.c.l.b16 %v1302
    %v1632 = vunpack.c.h.b16 %v1302
    %v1633 = vunpack.c.l.b16 %v1303
    %v1634 = vunpack.c.h.b16 %v1303
    %v1635 = vunpack.c.l.b16 %v1304
    %v1636 = vunpack.c.h.b16 %v1304
    %v1637 = vunpack.c.l.b16 %v1305
    %v1638 = vunpack.c.h.b16 %v1305
    %v1639 = vunpack.c.l.b16 %v1306
    %v1640 = vunpack.c.h.b16 %v1306
    %v1641 = vunpack.c.l.b16 %v1307
    %v1642 = vunpack.c.h.b16 %v1307
    %v1643 = vunpack.c.l.b16 %v1308
    %v1644 = vunpack.c.h.b16 %v1308
    %v1645 = vunpack.c.l.b16 %v1309
    %v1646 = vunpack.c.h.b16 %v1309
    %v1647 = vunpack.c.l.b16 %v1310
    %v1648 = vunpack.c.h.b16 %v1310
    %v1649 = vunpack.c.l.b16 %v1311
    %v1650 = vunpack.c.h.b16 %v1311
    %v1651 = vunpack.c.l.b16 %v1312
    %v1652 = vunpack.c.h.b16 %v1312
    %v1653 = vunpack.c.l.b16 %v1313
    %v1654 = vunpack.c.h.b16 %v1313
    %v1655 = vunpack.c.l.b16 %v1314
    %v1656 = vunpack.c.h.b16 %v1314
    %v1657 = vunpack.c.l.b16 %v1315
    %v1658 = vunpack.c.h.b16 %v1315
    %v1659 = vunpack.c.l.b16 %v1316
    %v1660 = vunpack.c.h.b16 %v1316
    %v1661 = vunpack.c.l.b16 %v1317
    %v1662 = vunpack.c.h.b16 %v1317
    %v1663 = vunpack.c.l.b16 %v1318
    %v1664 = vunpack.c.h.b16 %v1318
    %v1665 = vunpack.c.l.b16 %v1319
    %v1666 = vunpack.c.h.b16 %v1319
    %v1667 = vunpack.c.l.b16 %v1320
    %v1668 = vunpack.c.h.b16 %v1320
    %v1669 = vunpack.c.l.b16 %v1321
    %v1670 = vunpack.c.h.b16 %v1321
    %v1671 = vunpack.c.l.b16 %v1322
    %v1672 = vunpack.c.h.b16 %v1322
    %v1673 = vunpack.c.l.b16 %v1323
    %v1674 = vunpack.c.h.b16 %v1323
    %v1675 = vunpack.c.l.b16 %v1324
    %v1676 = vunpack.c.h.b16 %v1324
    %v1677 = vunpack.c.l.b16 %v1325
    %v1678 = vunpack.c.h.b16 %v1325
    %v1679 = vunpack.c.l.b16 %v1326
    %v1680 = vunpack.c.h.b16 %v1326
    %v1681 = vunpack.c.l.b16 %v1327
    %v1682 = vunpack.c.h.b16 %v1327
    %v1683 = vunpack.c.l.b16 %v1328
    %v1684 = vunpack.c.h.b16 %v1328
    %v1685 = vunpack.c.l.b16 %v1329
    %v1686 = vunpack.c.h.b16 %v1329
    %v1687 = vunpack.c.l.b16 %v1330
    %v1688 = vunpack.c.h.b16 %v1330
    %v1689 = vunpack.c.l.b16 %v1331
    %v1690 = vunpack.c.h.b16 %v1331
    %v1691 = vunpack.c.l.b16 %v1332
    %v1692 = vunpack.c.h.b16 %v1332
    %v1693 = vunpack.c.l.b16 %v1333
    %v1694 = vunpack.c.h.b16 %v1333
    %v1695 = vunpack.c.l.b16 %v1334
    %v1696 = vunpack.c.h.b16 %v1334
    %v1697 = vunpack.c.l.b16 %v1335
    %v1698 = vunpack.c.h.b16 %v1335
    %v1699 = vunpack.c.l.b16 %v1336
    %v1700 = vunpack.c.h.b16 %v1336
    %v1701 = vunpack.c.l.b16 %v1337
    %v1702 = vunpack.c.h.b16 %v1337
    %v1703 = vunpack.c.l.b16 %v1338
    %v1704 = vunpack.c.h.b16 %v1338
    %v1705 = vunpack.c.l.b16 %v1339
    %v1706 = vunpack.c.h.b16 %v1339
    %v1707 = vunpack.c.l.b16 %v1340
    %v1708 = vunpack.c.h.b16 %v1340
    %v1709 = vunpack.c.l.b16 %v1341
    %v1710 = vunpack.c.h.b16 %v1341
    %v1711 = vunpack.c.l.b16 %v1342
    %v1712 = vunpack.c.h.b16 %v1342
    %v1713 = vunpack.c.l.b16 %v1343
    %v1714 = vunpack.c.h.b16 %v1343
    %v1715 = vunpack.c.l.b16 %v1344
    %v1716 = vunpack.c.h.b16 %v1344
    %v1717 = vunpack.c.l.b16 %v1345
    %v1718 = vunpack.c.h.b16 %v1345
    %v1719 = vunpack.c.l.b16 %v1346
    %v1720 = vunpack.c.h.b16 %v1346
    %v1721 = vunpack.c.l.b16 %v1347
    %v1722 = vunpack.c.h.b16 %v1347
    %v1723 = vunpack.c.l.b16 %v1348
    %v1724 = vunpack.c.h.b16 %v1348
    %v1725 = vunpack.c.l.b16 %v1349
    %v1726 = vunpack.c.h.b16 %v1349
    %v1727 = vunpack.c.l.b16 %v1350
    %v1728 = vunpack.c.h.b16 %v1350
    %v1729 = vunpack.c.l.b16 %v1351
    %v1730 = vunpack.c.h.b16 %v1351
    %v1731 = vunpack.c.l.b16 %v1352
    %v1732 = vunpack.c.h.b16 %v1352
    %v1733 = vunpack.c.l.b16 %v1353
    %v1734 = vunpack.c.h.b16 %v1353
    %v1735 = vunpack.c.l.b16 %v1354
    %v1736 = vunpack.c.h.b16 %v1354
    %v1737 = vunpack.c.l.b16 %v1355
    %v1738 = vunpack.c.h.b16 %v1355
    %v1739 = vunpack.c.l.b16 %v1356
    %v1740 = vunpack.c.h.b16 %v1356
    %v1741 = vunpack.c.l.b16 %v1357
    %v1742 = vunpack.c.h.b16 %v1357
    %v1743 = vunpack.c.l.b16 %v1358
    %v1744 = vunpack.c.h.b16 %v1358
    %v1745 = vunpack.c.l.b16 %v1359
    %v1746 = vunpack.c.h.b16 %v1359
    %v1747 = vunpack.c.l.b16 %v1360
    %v1748 = vunpack.c.h.b16 %v1360
    %v1749 = vunpack.c.l.b16 %v1361
    %v1750 = vunpack.c.h.b16 %v1361
    %v1751 = vunpack.c.l.b16 %v1362
    %v1752 = vunpack.c.h.b16 %v1362
    %v1753 = vunpack.c.l.b16 %v1363
    %v1754 = vunpack.c.h.b16 %v1363
    %v1755 = vunpack.c.l.b16 %v1364
    %v1756 = vunpack.c.h.b16 %v1364
    %v1757 = vunpack.c.l.b16 %v1365
    %v1758 = vunpack.c.h.b16 %v1365
    %v1759 = vunpack.c.l.b16 %v1366
    %v1760 = vunpack.c.h.b16 %v1366
    %v1761 = vunpack.c.l.b16 %v1367
    %v1762 = vunpack.c.h.b16 %v1367
    %v1763 = vunpack.c.l.b16 %v1368
    %v1764 = vunpack.c.h.b16 %v1368
    %v1765 = vunpack.c.l.b16 %v1369
    %v1766 = vunpack.c.h.b16 %v1369
    %v1767 = vunpack.c.l.b16 %v1370
    %v1768 = vunpack.c.h.b16 %v1370
    %v1769 = vunpack.c.l.b16 %v1371
    %v1770 = vunpack.c.h.b16 %v1371
    %v1771 = vunpack.c.l.b16 %v1372
    %v1772 = vunpack.c.h.b16 %v1372
    %v1773 = vunpack.c.l.b16 %v1373
    %v1774 = vunpack.c.h.b16 %v1373
    %v1775 = vunpack.c.l.b16 %v1374
    %v1776 = vunpack.c.h.b16 %v1374
    %v1777 = vunpack.c.l.b16 %v1375
    %v1778 = vunpack.c.h.b16 %v1375
    %v1779 = vunpack.c.l.b16 %v1376
    %v1780 = vunpack.c.h.b16 %v1376
    %v1781 = vunpack.c.l.b16 %v1377
    %v1782 = vunpack.c.h.b16 %v1377
    %v1783 = vunpack.c.l.b16 %v1378
    %v1784 = vunpack.c.h.b16 %v1378
    %v1785 = vpack.c.b16 %v1533, %v1529
    %v1786 = vpack.c.b16 %v1534, %v1530
    %v1787 = vpack.c.b16 %v1535, %v1531
    %v1788 = vpack.c.b16 %v1536, %v1532
    %v1789 = vpack.c.b16 %v1541, %v1537
    %v1790 = vpack.c.b16 %v1542, %v1538
    %v1791 = vpack.c.b16 %v1543, %v1539
    %v1792 = vpack.c.b16 %v1544, %v1540
    %v1793 = vpack.c.b16 %v1549, %v1545
    %v1794 = vpack.c.b16 %v1550, %v1546
    %v1795 = vpack.c.b16 %v1551, %v1547
    %v1796 = vpack.c.b16 %v1552, %v1548
    %v1797 = vpack.c.b16 %v1557, %v1553
    %v1798 = vpack.c.b16 %v1558, %v1554
    %v1799 = vpack.c.b16 %v1559, %v1555
    %v1800 = vpack.c.b16 %v1560, %v1556
    %v1801 = vpack.c.b16 %v1565, %v1561
    %v1802 = vpack.c.b16 %v1566, %v1562
    %v1803 = vpack.c.b16 %v1567, %v1563
    %v1804 = vpack.c.b16 %v1568, %v1564
    %v1805 = vpack.c.b16 %v1573, %v1569
    %v1806 = vpack.c.b16 %v1574, %v1570
    %v1807 = vpack.c.b16 %v1575, %v1571
    %v1808 = vpack.c.b16 %v1576, %v1572
    %v1809 = vpack.c.b16 %v1581, %v1577
    %v1810 = vpack.c.b16 %v1582, %v1578
    %v1811 = vpack.c.b16 %v1583, %v1579
    %v1812 = vpack.c.b16 %v1584, %v1580
    %v1813 = vpack.c.b16 %v1589, %v1585
    %v1814 = vpack.c.b16 %v1590, %v1586
    %v1815 = vpack.c.b16 %v1591, %v1587
    %v1816 = vpack.c.b16 %v1592, %v1588
    %v1817 = vpack.c.b16 %v1597, %v1593
    %v1818 = vpack.c.b16 %v1598, %v1594
    %v1819 = vpack.c.b16 %v1599, %v1595
    %v1820 = vpack.c.b16 %v1600, %v1596
    %v1821 = vpack.c.b16 %v1605, %v1601
    %v1822 = vpack.c.b16 %v1606, %v1602
    %v1823 = vpack.c.b16 %v1607, %v1603
    %v1824 = vpack.c.b16 %v1608, %v1604
    %v1825 = vpack.c.b16 %v1613, %v1609
    %v1826 = vpack.c.b16 %v1614, %v1610
    %v1827 = vpack.c.b16 %v1615, %v1611
    %v1828 = vpack.c.b16 %v1616, %v1612
    %v1829 = vpack.c.b16 %v1621, %v1617
    %v1830 = vpack.c.b16 %v1622, %v1618
    %v1831 = vpack.c.b16 %v1623, %v1619
    %v1832 = vpack.c.b16 %v1624, %v1620
    %v1833 = vpack.c.b16 %v1629, %v1625
    %v1834 = vpack.c.b16 %v1630, %v1626
    %v1835 = vpack.c.b16 %v1631, %v1627
    %v1836 = vpack.c.b16 %v1632, %v1628
    %v1837 = vpack.c.b16 %v1637, %v1633
    %v1838 = vpack.c.b16 %v1638, %v1634
    %v1839 = vpack.c.b16 %v1639, %v1635
    %v1840 = vpack.c.b16 %v1640, %v1636
    %v1841 = vpack.c.b16 %v1645, %v1641
    %v1842 = vpack.c.b16 %v1646, %v1642
    %v1843 = vpack.c.b16 %v1647, %v1643
    %v1844 = vpack.c.b16 %v1648, %v1644
    %v1845 = vpack.c.b16 %v1653, %v1649
    %v1846 = vpack.c.b16 %v1654, %v1650
    %v1847 = vpack.c.b16 %v1655, %v1651
    %v1848 = vpack.c.b16 %v1656, %v1652
    %v1849 = vpack.c.b16 %v1661, %v1657
    %v1850 = vpack.c.b16 %v1662, %v1658
    %v1851 = vpack.c.b16 %v1663, %v1659
    %v1852 = vpack.c.b16 %v1664, %v1660
    %v1853 = vpack.c.b16 %v1669, %v1665
    %v1854 = vpack.c.b16 %v1670, %v1666
    %v1855 = vpack.c.b16 %v1671, %v1667
    %v1856 = vpack.c.b16 %v1672, %v1668
    %v1857 = vpack.c.b16 %v1677, %v1673
    %v1858 = vpack.c.b16 %v1678, %v1674
    %v1859 = vpack.c.b16 %v1679, %v1675
    %v1860 = vpack.c.b16 %v1680, %v1676
    %v1861 = vpack.c.b16 %v1685, %v1681
    %v1862 = vpack.c.b16 %v1686, %v1682
    %v1863 = vpack.c.b16 %v1687, %v1683
    %v1864 = vpack.c.b16 %v1688, %v1684
    %v1865 = vpack.c.b16 %v1693, %v1689
    %v1866 = vpack.c.b16 %v1694, %v1690
    %v1867 = vpack.c.b16 %v1695, %v1691
    %v1868 = vpack.c.b16 %v1696, %v1692
    %v1869 = vpack.c.b16 %v1701, %v1697
    %v1870 = vpack.c.b16 %v1702, %v1698
    %v1871 = vpack.c.b16 %v1703, %v1699
    %v1872 = vpack.c.b16 %v1704, %v1700
    %v1873 = vpack.c.b16 %v1709, %v1705
    %v1874 = vpack.c.b16 %v1710, %v1706
    %v1875 = vpack.c.b16 %v1711, %v1707
    %v1876 = vpack.c.b16 %v1712, %v1708
    %v1877 = vpack.c.b16 %v1717, %v1713
    %v1878 = vpack.c.b16 %v1718, %v1714
    %v1879 = vpack.c.b16 %v1719, %v1715
    %v1880 = vpack.c.b16 %v1720, %v1716
    %v1881 = vpack.c.b16 %v1725, %v1721
    %v1882 = vpack.c.b16 %v1726, %v1722
    %v1883 = vpack.c.b16 %v1727, %v1723
    %v1884 = vpack.c.b16 %v1728, %v1724
    %v1885 = vpack.c.b16 %v1733, %v1729
    %v1886 = vpack.c.b16 %v1734, %v1730
    %v1887 = vpack.c.b16 %v1735, %v1731
    %v1888 = vpack.c.b16 %v1736, %v1732
    %v1889 = vpack.c.b16 %v1741, %v1737
    %v1890 = vpack.c.b16 %v1742, %v1738
    %v1891 = vpack.c.b16 %v1743, %v1739
    %v1892 = vpack.c.b16 %v1744, %v1740
    %v1893 = vpack.c.b16 %v1749, %v1745
    %v1894 = vpack.c.b16 %v1750, %v1746
    %v1895 = vpack.c.b16 %v1751, %v1747
    %v1896 = vpack.c.b16 %v1752, %v1748
    %v1897 = vpack.c.b16 %v1757, %v1753
    %v1898 = vpack.c.b16 %v1758, %v1754
    %v1899 = vpack.c.b16 %v1759, %v1755
    %v1900 = vpack.c.b16 %v1760, %v1756
    %v1901 = vpack.c.b16 %v1765, %v1761
    %v1902 = vpack.c.b16 %v1766, %v1762
    %v1903 = vpack.c.b16 %v1767, %v1763
    %v1904 = vpack.c.b16 %v1768, %v1764
    %v1905 = vpack.c.b16 %v1773, %v1769
    %v1906 = vpack.c.b16 %v1774, %v1770
    %v1907 = vpack.c.b16 %v1775, %v1771
    %v1908 = vpack.c.b16 %v1776, %v1772
    %v1909 = vpack.c.b16 %v1781, %v1777
    %v1910 = vpack.c.b16 %v1782, %v1778
    %v1911 = vpack.c.b16 %v1783, %v1779
    %v1912 = vpack.c.b16 %v1784, %v1780
    %2041 = vmatprep.subr.bf16.mxu0 %v1786
    %2042 = vmatpush1.bf16.msra.mxu0 %v1785
    %2043 = vmatprep.subr.bf16.mxu0 %v1790
    %2044 = vmatpush1.bf16.msra.mxu0 %v1789
    %2045 = vmatprep.subr.bf16.mxu0 %v1794
    %2046 = vmatpush1.bf16.msra.mxu0 %v1793
    %2047 = vmatprep.subr.bf16.mxu0 %v1798
    %2048 = vmatpush1.bf16.msra.mxu0 %v1797
    %2049 = vmatprep.subr.bf16.mxu0 %v1802
    %2050 = vmatpush1.bf16.msra.mxu0 %v1801
    %2051 = vmatprep.subr.bf16.mxu0 %v1806
    %2052 = vmatpush1.bf16.msra.mxu0 %v1805
    %2053 = vmatprep.subr.bf16.mxu0 %v1810
    %2054 = vmatpush1.bf16.msra.mxu0 %v1809
    %2055 = vmatprep.subr.bf16.mxu0 %v1814
    %2056 = vmatpush1.bf16.msra.mxu0 %v1813
    %2057 = vmatprep.subr.bf16.mxu0 %v1818
    %2058 = vmatpush1.bf16.msra.mxu0 %v1817
    %2059 = vmatprep.subr.bf16.mxu0 %v1822
    %2060 = vmatpush1.bf16.msra.mxu0 %v1821
    %2061 = vmatprep.subr.bf16.mxu0 %v1826
    %2062 = vmatpush1.bf16.msra.mxu0 %v1825
    %2063 = vmatprep.subr.bf16.mxu0 %v1830
    %2064 = vmatpush1.bf16.msra.mxu0 %v1829
    %2065 = vmatprep.subr.bf16.mxu0 %v1834
    %2066 = vmatpush1.bf16.msra.mxu0 %v1833
    %2067 = vmatprep.subr.bf16.mxu0 %v1838
    %2068 = vmatpush1.bf16.msra.mxu0 %v1837
    %2069 = vmatprep.subr.bf16.mxu0 %v1842
    %2070 = vmatpush1.bf16.msra.mxu0 %v1841
    %2071 = vmatprep.subr.bf16.mxu0 %v1846
    %2072 = vmatpush1.bf16.msra.mxu0 %v1845
    %2073 = vmatprep.mubr.bf16.mxu0 %v1248
    %2074 = vmatmul.mubr.bf16.gmra.mrb[0].mxu0 %v1247
    %v2075 = vpop.f32.mrb[0].mxu0
    %v2076 = vadd.f32 %v1384, %v2075
    %v2077 = vpop.f32.mrb[0].mxu0
    %v2078 = vadd.f32 %v1388, %v2077
    %v2079 = vpop.f32.mrb[0].mxu0
    %v2080 = vadd.f32 %v1384, %v2079
    %v2081 = vpop.f32.mrb[0].mxu0
    %v2082 = vadd.f32 %v1388, %v2081
    %2083 = vdwg.mxu0
    %2084 = vmatprep.subr.bf16.mxu0 %v1850
    %2085 = vmatpush1.bf16.msra.mxu0 %v1849
    %2086 = vmatprep.subr.bf16.mxu0 %v1854
    %2087 = vmatpush1.bf16.msra.mxu0 %v1853
    %2088 = vmatprep.subr.bf16.mxu0 %v1858
    %2089 = vmatpush1.bf16.msra.mxu0 %v1857
    %2090 = vmatprep.subr.bf16.mxu0 %v1862
    %2091 = vmatpush1.bf16.msra.mxu0 %v1861
    %2092 = vmatprep.subr.bf16.mxu0 %v1866
    %2093 = vmatpush1.bf16.msra.mxu0 %v1865
    %2094 = vmatprep.subr.bf16.mxu0 %v1870
    %2095 = vmatpush1.bf16.msra.mxu0 %v1869
    %2096 = vmatprep.subr.bf16.mxu0 %v1874
    %2097 = vmatpush1.bf16.msra.mxu0 %v1873
    %2098 = vmatprep.subr.bf16.mxu0 %v1878
    %2099 = vmatpush1.bf16.msra.mxu0 %v1877
    %2100 = vmatprep.subr.bf16.mxu0 %v1882
    %2101 = vmatpush1.bf16.msra.mxu0 %v1881
    %2102 = vmatprep.subr.bf16.mxu0 %v1886
    %2103 = vmatpush1.bf16.msra.mxu0 %v1885
    %2104 = vmatprep.subr.bf16.mxu0 %v1890
    %2105 = vmatpush1.bf16.msra.mxu0 %v1889
    %2106 = vmatprep.subr.bf16.mxu0 %v1894
    %2107 = vmatpush1.bf16.msra.mxu0 %v1893
    %2108 = vmatprep.subr.bf16.mxu0 %v1898
    %2109 = vmatpush1.bf16.msra.mxu0 %v1897
    %2110 = vmatprep.subr.bf16.mxu0 %v1902
    %2111 = vmatpush1.bf16.msra.mxu0 %v1901
    %2112 = vmatprep.subr.bf16.mxu0 %v1906
    %2113 = vmatpush1.bf16.msra.mxu0 %v1905
    %2114 = vmatprep.subr.bf16.mxu0 %v1910
    %2115 = vmatpush1.bf16.msra.mxu0 %v1909
    %2116 = vmatprep.mubr.bf16.mxu0 %v1250
    %2117 = vmatmul.mubr.bf16.gmra.mrb[0].mxu0 %v1249
    %v2118 = vpop.f32.mrb[0].mxu0
    %v2119 = vadd.f32 %v2076, %v2118
    %v2120 = vpop.f32.mrb[0].mxu0
    %v2121 = vadd.f32 %v2078, %v2120
    %v2122 = vpop.f32.mrb[0].mxu0
    %v2123 = vadd.f32 %v2080, %v2122
    %v2124 = vpop.f32.mrb[0].mxu0
    %v2125 = vadd.f32 %v2082, %v2124
    %2126 = vdwg.mxu0
    %2127 = vmatprep.subr.bf16.mxu0 %v1788
    %2128 = vmatpush1.bf16.msra.mxu0 %v1787
    %2129 = vmatprep.subr.bf16.mxu0 %v1792
    %2130 = vmatpush1.bf16.msra.mxu0 %v1791
    %2131 = vmatprep.subr.bf16.mxu0 %v1796
    %2132 = vmatpush1.bf16.msra.mxu0 %v1795
    %2133 = vmatprep.subr.bf16.mxu0 %v1800
    %2134 = vmatpush1.bf16.msra.mxu0 %v1799
    %2135 = vmatprep.subr.bf16.mxu0 %v1804
    %2136 = vmatpush1.bf16.msra.mxu0 %v1803
    %2137 = vmatprep.subr.bf16.mxu0 %v1808
    %2138 = vmatpush1.bf16.msra.mxu0 %v1807
    %2139 = vmatprep.subr.bf16.mxu0 %v1812
    %2140 = vmatpush1.bf16.msra.mxu0 %v1811
    %2141 = vmatprep.subr.bf16.mxu0 %v1816
    %2142 = vmatpush1.bf16.msra.mxu0 %v1815
    %2143 = vmatprep.subr.bf16.mxu0 %v1820
    %2144 = vmatpush1.bf16.msra.mxu0 %v1819
    %2145 = vmatprep.subr.bf16.mxu0 %v1824
    %2146 = vmatpush1.bf16.msra.mxu0 %v1823
    %2147 = vmatprep.subr.bf16.mxu0 %v1828
    %2148 = vmatpush1.bf16.msra.mxu0 %v1827
    %2149 = vmatprep.subr.bf16.mxu0 %v1832
    %2150 = vmatpush1.bf16.msra.mxu0 %v1831
    %2151 = vmatprep.subr.bf16.mxu0 %v1836
    %2152 = vmatpush1.bf16.msra.mxu0 %v1835
    %2153 = vmatprep.subr.bf16.mxu0 %v1840
    %2154 = vmatpush1.bf16.msra.mxu0 %v1839
    %2155 = vmatprep.subr.bf16.mxu0 %v1844
    %2156 = vmatpush1.bf16.msra.mxu0 %v1843
    %2157 = vmatprep.subr.bf16.mxu0 %v1848
    %2158 = vmatpush1.bf16.msra.mxu0 %v1847
    %2159 = vmatprep.mubr.bf16.mxu0 %v1248
    %2160 = vmatmul.mubr.bf16.gmra.mrb[0].mxu0 %v1247
    %v2161 = vpop.f32.mrb[0].mxu0
    %v2162 = vadd.f32 %v1392, %v2161
    %v2163 = vpop.f32.mrb[0].mxu0
    %v2164 = vadd.f32 %v1396, %v2163
    %v2165 = vpop.f32.mrb[0].mxu0
    %v2166 = vadd.f32 %v1392, %v2165
    %v2167 = vpop.f32.mrb[0].mxu0
    %v2168 = vadd.f32 %v1396, %v2167
    %2169 = vdwg.mxu0
    %2170 = vmatprep.subr.bf16.mxu0 %v1852
    %2171 = vmatpush1.bf16.msra.mxu0 %v1851
    %2172 = vmatprep.subr.bf16.mxu0 %v1856
    %2173 = vmatpush1.bf16.msra.mxu0 %v1855
    %2174 = vmatprep.subr.bf16.mxu0 %v1860
    %2175 = vmatpush1.bf16.msra.mxu0 %v1859
    %2176 = vmatprep.subr.bf16.mxu0 %v1864
    %2177 = vmatpush1.bf16.msra.mxu0 %v1863
    %2178 = vmatprep.subr.bf16.mxu0 %v1868
    %2179 = vmatpush1.bf16.msra.mxu0 %v1867
    %2180 = vmatprep.subr.bf16.mxu0 %v1872
    %2181 = vmatpush1.bf16.msra.mxu0 %v1871
    %2182 = vmatprep.subr.bf16.mxu0 %v1876
    %2183 = vmatpush1.bf16.msra.mxu0 %v1875
    %2184 = vmatprep.subr.bf16.mxu0 %v1880
    %2185 = vmatpush1.bf16.msra.mxu0 %v1879
    %2186 = vmatprep.subr.bf16.mxu0 %v1884
    %2187 = vmatpush1.bf16.msra.mxu0 %v1883
    %2188 = vmatprep.subr.bf16.mxu0 %v1888
    %2189 = vmatpush1.bf16.msra.mxu0 %v1887
    %2190 = vmatprep.subr.bf16.mxu0 %v1892
    %2191 = vmatpush1.bf16.msra.mxu0 %v1891
    %2192 = vmatprep.subr.bf16.mxu0 %v1896
    %2193 = vmatpush1.bf16.msra.mxu0 %v1895
    %2194 = vmatprep.subr.bf16.mxu0 %v1900
    %2195 = vmatpush1.bf16.msra.mxu0 %v1899
    %2196 = vmatprep.subr.bf16.mxu0 %v1904
    %2197 = vmatpush1.bf16.msra.mxu0 %v1903
    %2198 = vmatprep.subr.bf16.mxu0 %v1908
    %2199 = vmatpush1.bf16.msra.mxu0 %v1907
    %2200 = vmatprep.subr.bf16.mxu0 %v1912
    %2201 = vmatpush1.bf16.msra.mxu0 %v1911
    %2202 = vmatprep.mubr.bf16.mxu0 %v1250
    %2203 = vmatmul.mubr.bf16.gmra.mrb[0].mxu0 %v1249
    %v2204 = vpop.f32.mrb[0].mxu0
    %v2205 = vadd.f32 %v2162, %v2204
    %v2206 = vpop.f32.mrb[0].mxu0
    %v2207 = vadd.f32 %v2164, %v2206
    %v2208 = vpop.f32.mrb[0].mxu0
    %v2209 = vadd.f32 %v2166, %v2208
    %v2210 = vpop.f32.mrb[0].mxu0
    %v2211 = vadd.f32 %v2168, %v2210
    %2212 = vdwg.mxu0
    %v2213 = vmax.f32 %v2119, 0.0
    %v2214 = vmax.f32 %v2121, 0.0
    %v2215 = vmax.f32 %v2205, 0.0
    %v2216 = vmax.f32 %v2207, 0.0
    %v2217 = vmax.f32 %v2123, 0.0
    %v2218 = vmax.f32 %v2125, 0.0
    %v2219 = vmax.f32 %v2209, 0.0
    %v2220 = vmax.f32 %v2211, 0.0
    %v2221 = vpack.c.bf16 %v2217, %v2213
    %v2222 = vpack.c.bf16 %v2218, %v2214
    %v2223 = vpack.c.bf16 %v2219, %v2215
    %v2224 = vpack.c.bf16 %v2220, %v2216
    %v2225 = vld [vmem:[#allocation10] sm:$0xff]
    %v2226 = vld [vmem:[#allocation10 + $0x8] sm:$0xff]
    %v2227 = vld [vmem:[#allocation10 + $0x10] sm:$0xff]
    %v2228 = vld [vmem:[#allocation10 + $0x18] sm:$0xff]
    %v2229 = vld [vmem:[#allocation10 + $0x20] sm:$0xff]
    %v2230 = vld [vmem:[#allocation10 + $0x28] sm:$0xff]
    %v2231 = vld [vmem:[#allocation10 + $0x30] sm:$0xff]
    %v2232 = vld [vmem:[#allocation10 + $0x38] sm:$0xff]
    %v2233 = vld [vmem:[#allocation10 + $0x40] sm:$0xff]
    %v2234 = vld [vmem:[#allocation10 + $0x48] sm:$0xff]
    %v2235 = vld [vmem:[#allocation10 + $0x50] sm:$0xff]
    %v2236 = vld [vmem:[#allocation10 + $0x58] sm:$0xff]
    %v2237 = vld [vmem:[#allocation10 + $0x60] sm:$0xff]
    %v2238 = vld [vmem:[#allocation10 + $0x68] sm:$0xff]
    %v2239 = vld [vmem:[#allocation10 + $0x70] sm:$0xff]
    %v2240 = vld [vmem:[#allocation10 + $0x78] sm:$0xff]
    %v2241 = vld [vmem:[#allocation10 + $0x80] sm:$0xff]
    %v2242 = vld [vmem:[#allocation10 + $0x88] sm:$0xff]
    %v2243 = vld [vmem:[#allocation10 + $0x90] sm:$0xff]
    %v2244 = vld [vmem:[#allocation10 + $0x98] sm:$0xff]
    %v2245 = vld [vmem:[#allocation10 + $0xa0] sm:$0xff]
    %v2246 = vld [vmem:[#allocation10 + $0xa8] sm:$0xff]
    %v2247 = vld [vmem:[#allocation10 + $0xb0] sm:$0xff]
    %v2248 = vld [vmem:[#allocation10 + $0xb8] sm:$0xff]
    %v2249 = vld [vmem:[#allocation10 + $0xc0] sm:$0xff]
    %v2250 = vld [vmem:[#allocation10 + $0xc8] sm:$0xff]
    %v2251 = vld [vmem:[#allocation10 + $0xd0] sm:$0xff]
    %v2252 = vld [vmem:[#allocation10 + $0xd8] sm:$0xff]
    %v2253 = vld [vmem:[#allocation10 + $0xe0] sm:$0xff]
    %v2254 = vld [vmem:[#allocation10 + $0xe8] sm:$0xff]
    %v2255 = vld [vmem:[#allocation10 + $0xf0] sm:$0xff]
    %v2256 = vld [vmem:[#allocation10 + $0xf8] sm:$0xff]
    %v2257 = vld [vmem:[#allocation10 + $0x100] sm:$0xff]
    %v2258 = vld [vmem:[#allocation10 + $0x108] sm:$0xff]
    %v2259 = vld [vmem:[#allocation10 + $0x110] sm:$0xff]
    %v2260 = vld [vmem:[#allocation10 + $0x118] sm:$0xff]
    %v2261 = vld [vmem:[#allocation10 + $0x120] sm:$0xff]
    %v2262 = vld [vmem:[#allocation10 + $0x128] sm:$0xff]
    %v2263 = vld [vmem:[#allocation10 + $0x130] sm:$0xff]
    %v2264 = vld [vmem:[#allocation10 + $0x138] sm:$0xff]
    %v2265 = vld [vmem:[#allocation10 + $0x140] sm:$0xff]
    %v2266 = vld [vmem:[#allocation10 + $0x148] sm:$0xff]
    %v2267 = vld [vmem:[#allocation10 + $0x150] sm:$0xff]
    %v2268 = vld [vmem:[#allocation10 + $0x158] sm:$0xff]
    %v2269 = vld [vmem:[#allocation10 + $0x160] sm:$0xff]
    %v2270 = vld [vmem:[#allocation10 + $0x168] sm:$0xff]
    %v2271 = vld [vmem:[#allocation10 + $0x170] sm:$0xff]
    %v2272 = vld [vmem:[#allocation10 + $0x178] sm:$0xff]
    %v2273 = vld [vmem:[#allocation10 + $0x180] sm:$0xff]
    %v2274 = vld [vmem:[#allocation10 + $0x188] sm:$0xff]
    %v2275 = vld [vmem:[#allocation10 + $0x190] sm:$0xff]
    %v2276 = vld [vmem:[#allocation10 + $0x198] sm:$0xff]
    %v2277 = vld [vmem:[#allocation10 + $0x1a0] sm:$0xff]
    %v2278 = vld [vmem:[#allocation10 + $0x1a8] sm:$0xff]
    %v2279 = vld [vmem:[#allocation10 + $0x1b0] sm:$0xff]
    %v2280 = vld [vmem:[#allocation10 + $0x1b8] sm:$0xff]
    %v2281 = vld [vmem:[#allocation10 + $0x1c0] sm:$0xff]
    %v2282 = vld [vmem:[#allocation10 + $0x1c8] sm:$0xff]
    %v2283 = vld [vmem:[#allocation10 + $0x1d0] sm:$0xff]
    %v2284 = vld [vmem:[#allocation10 + $0x1d8] sm:$0xff]
    %v2285 = vld [vmem:[#allocation10 + $0x1e0] sm:$0xff]
    %v2286 = vld [vmem:[#allocation10 + $0x1e8] sm:$0xff]
    %v2287 = vld [vmem:[#allocation10 + $0x1f0] sm:$0xff]
    %v2288 = vld [vmem:[#allocation10 + $0x1f8] sm:$0xff]
    %v2289 = vld [vmem:[#allocation10 + $0x200] sm:$0xff]
    %v2290 = vld [vmem:[#allocation10 + $0x208] sm:$0xff]
    %v2291 = vld [vmem:[#allocation10 + $0x210] sm:$0xff]
    %v2292 = vld [vmem:[#allocation10 + $0x218] sm:$0xff]
    %v2293 = vld [vmem:[#allocation10 + $0x220] sm:$0xff]
    %v2294 = vld [vmem:[#allocation10 + $0x228] sm:$0xff]
    %v2295 = vld [vmem:[#allocation10 + $0x230] sm:$0xff]
    %v2296 = vld [vmem:[#allocation10 + $0x238] sm:$0xff]
    %v2297 = vld [vmem:[#allocation10 + $0x240] sm:$0xff]
    %v2298 = vld [vmem:[#allocation10 + $0x248] sm:$0xff]
    %v2299 = vld [vmem:[#allocation10 + $0x250] sm:$0xff]
    %v2300 = vld [vmem:[#allocation10 + $0x258] sm:$0xff]
    %v2301 = vld [vmem:[#allocation10 + $0x260] sm:$0xff]
    %v2302 = vld [vmem:[#allocation10 + $0x268] sm:$0xff]
    %v2303 = vld [vmem:[#allocation10 + $0x270] sm:$0xff]
    %v2304 = vld [vmem:[#allocation10 + $0x278] sm:$0xff]
    %v2305 = vld [vmem:[#allocation10 + $0x280] sm:$0xff]
    %v2306 = vld [vmem:[#allocation10 + $0x288] sm:$0xff]
    %v2307 = vld [vmem:[#allocation10 + $0x290] sm:$0xff]
    %v2308 = vld [vmem:[#allocation10 + $0x298] sm:$0xff]
    %v2309 = vld [vmem:[#allocation10 + $0x2a0] sm:$0xff]
    %v2310 = vld [vmem:[#allocation10 + $0x2a8] sm:$0xff]
    %v2311 = vld [vmem:[#allocation10 + $0x2b0] sm:$0xff]
    %v2312 = vld [vmem:[#allocation10 + $0x2b8] sm:$0xff]
    %v2313 = vld [vmem:[#allocation10 + $0x2c0] sm:$0xff]
    %v2314 = vld [vmem:[#allocation10 + $0x2c8] sm:$0xff]
    %v2315 = vld [vmem:[#allocation10 + $0x2d0] sm:$0xff]
    %v2316 = vld [vmem:[#allocation10 + $0x2d8] sm:$0xff]
    %v2317 = vld [vmem:[#allocation10 + $0x2e0] sm:$0xff]
    %v2318 = vld [vmem:[#allocation10 + $0x2e8] sm:$0xff]
    %v2319 = vld [vmem:[#allocation10 + $0x2f0] sm:$0xff]
    %v2320 = vld [vmem:[#allocation10 + $0x2f8] sm:$0xff]
    %v2321 = vld [vmem:[#allocation10 + $0x300] sm:$0xff]
    %v2322 = vld [vmem:[#allocation10 + $0x308] sm:$0xff]
    %v2323 = vld [vmem:[#allocation10 + $0x310] sm:$0xff]
    %v2324 = vld [vmem:[#allocation10 + $0x318] sm:$0xff]
    %v2325 = vld [vmem:[#allocation10 + $0x320] sm:$0xff]
    %v2326 = vld [vmem:[#allocation10 + $0x328] sm:$0xff]
    %v2327 = vld [vmem:[#allocation10 + $0x330] sm:$0xff]
    %v2328 = vld [vmem:[#allocation10 + $0x338] sm:$0xff]
    %v2329 = vld [vmem:[#allocation10 + $0x340] sm:$0xff]
    %v2330 = vld [vmem:[#allocation10 + $0x348] sm:$0xff]
    %v2331 = vld [vmem:[#allocation10 + $0x350] sm:$0xff]
    %v2332 = vld [vmem:[#allocation10 + $0x358] sm:$0xff]
    %v2333 = vld [vmem:[#allocation10 + $0x360] sm:$0xff]
    %v2334 = vld [vmem:[#allocation10 + $0x368] sm:$0xff]
    %v2335 = vld [vmem:[#allocation10 + $0x370] sm:$0xff]
    %v2336 = vld [vmem:[#allocation10 + $0x378] sm:$0xff]
    %v2337 = vld [vmem:[#allocation10 + $0x380] sm:$0xff]
    %v2338 = vld [vmem:[#allocation10 + $0x388] sm:$0xff]
    %v2339 = vld [vmem:[#allocation10 + $0x390] sm:$0xff]
    %v2340 = vld [vmem:[#allocation10 + $0x398] sm:$0xff]
    %v2341 = vld [vmem:[#allocation10 + $0x3a0] sm:$0xff]
    %v2342 = vld [vmem:[#allocation10 + $0x3a8] sm:$0xff]
    %v2343 = vld [vmem:[#allocation10 + $0x3b0] sm:$0xff]
    %v2344 = vld [vmem:[#allocation10 + $0x3b8] sm:$0xff]
    %v2345 = vld [vmem:[#allocation10 + $0x3c0] sm:$0xff]
    %v2346 = vld [vmem:[#allocation10 + $0x3c8] sm:$0xff]
    %v2347 = vld [vmem:[#allocation10 + $0x3d0] sm:$0xff]
    %v2348 = vld [vmem:[#allocation10 + $0x3d8] sm:$0xff]
    %v2349 = vld [vmem:[#allocation10 + $0x3e0] sm:$0xff]
    %v2350 = vld [vmem:[#allocation10 + $0x3e8] sm:$0xff]
    %v2351 = vld [vmem:[#allocation10 + $0x3f0] sm:$0xff]
    %v2352 = vld [vmem:[#allocation10 + $0x3f8] sm:$0xff]
    %v2353 = vld [vmem:[%s8] sm:$0xf]
    %v2355 = vlaneseq
    %v2356 = vshrl.u32 %v2355, 7
    %v2357 = vsub.s32 0, %v2356
    %v2358 = vrot.slane %v2353, %v2357
    %v2359 = vlaneseq
    %v2360 = vshrl.u32 %v2359, 7
    %v2361 = vsub.s32 1, %v2360
    %v2362 = vrot.slane %v2353, %v2361
    %v2363 = vlaneseq
    %v2364 = vshrl.u32 %v2363, 7
    %v2365 = vsub.s32 2, %v2364
    %v2366 = vrot.slane %v2353, %v2365
    %v2367 = vlaneseq
    %v2368 = vshrl.u32 %v2367, 7
    %v2369 = vsub.s32 3, %v2368
    %v2370 = vrot.slane %v2353, %v2369
    %v2503 = vunpack.c.l.b16 %v2225
    %v2504 = vunpack.c.h.b16 %v2225
    %v2505 = vunpack.c.l.b16 %v2226
    %v2506 = vunpack.c.h.b16 %v2226
    %v2507 = vunpack.c.l.b16 %v2227
    %v2508 = vunpack.c.h.b16 %v2227
    %v2509 = vunpack.c.l.b16 %v2228
    %v2510 = vunpack.c.h.b16 %v2228
    %v2511 = vunpack.c.l.b16 %v2229
    %v2512 = vunpack.c.h.b16 %v2229
    %v2513 = vunpack.c.l.b16 %v2230
    %v2514 = vunpack.c.h.b16 %v2230
    %v2515 = vunpack.c.l.b16 %v2231
    %v2516 = vunpack.c.h.b16 %v2231
    %v2517 = vunpack.c.l.b16 %v2232
    %v2518 = vunpack.c.h.b16 %v2232
    %v2519 = vunpack.c.l.b16 %v2233
    %v2520 = vunpack.c.h.b16 %v2233
    %v2521 = vunpack.c.l.b16 %v2234
    %v2522 = vunpack.c.h.b16 %v2234
    %v2523 = vunpack.c.l.b16 %v2235
    %v2524 = vunpack.c.h.b16 %v2235
    %v2525 = vunpack.c.l.b16 %v2236
    %v2526 = vunpack.c.h.b16 %v2236
    %v2527 = vunpack.c.l.b16 %v2237
    %v2528 = vunpack.c.h.b16 %v2237
    %v2529 = vunpack.c.l.b16 %v2238
    %v2530 = vunpack.c.h.b16 %v2238
    %v2531 = vunpack.c.l.b16 %v2239
    %v2532 = vunpack.c.h.b16 %v2239
    %v2533 = vunpack.c.l.b16 %v2240
    %v2534 = vunpack.c.h.b16 %v2240
    %v2535 = vunpack.c.l.b16 %v2241
    %v2536 = vunpack.c.h.b16 %v2241
    %v2537 = vunpack.c.l.b16 %v2242
    %v2538 = vunpack.c.h.b16 %v2242
    %v2539 = vunpack.c.l.b16 %v2243
    %v2540 = vunpack.c.h.b16 %v2243
    %v2541 = vunpack.c.l.b16 %v2244
    %v2542 = vunpack.c.h.b16 %v2244
    %v2543 = vunpack.c.l.b16 %v2245
    %v2544 = vunpack.c.h.b16 %v2245
    %v2545 = vunpack.c.l.b16 %v2246
    %v2546 = vunpack.c.h.b16 %v2246
    %v2547 = vunpack.c.l.b16 %v2247
    %v2548 = vunpack.c.h.b16 %v2247
    %v2549 = vunpack.c.l.b16 %v2248
    %v2550 = vunpack.c.h.b16 %v2248
    %v2551 = vunpack.c.l.b16 %v2249
    %v2552 = vunpack.c.h.b16 %v2249
    %v2553 = vunpack.c.l.b16 %v2250
    %v2554 = vunpack.c.h.b16 %v2250
    %v2555 = vunpack.c.l.b16 %v2251
    %v2556 = vunpack.c.h.b16 %v2251
    %v2557 = vunpack.c.l.b16 %v2252
    %v2558 = vunpack.c.h.b16 %v2252
    %v2559 = vunpack.c.l.b16 %v2253
    %v2560 = vunpack.c.h.b16 %v2253
    %v2561 = vunpack.c.l.b16 %v2254
    %v2562 = vunpack.c.h.b16 %v2254
    %v2563 = vunpack.c.l.b16 %v2255
    %v2564 = vunpack.c.h.b16 %v2255
    %v2565 = vunpack.c.l.b16 %v2256
    %v2566 = vunpack.c.h.b16 %v2256
    %v2567 = vunpack.c.l.b16 %v2257
    %v2568 = vunpack.c.h.b16 %v2257
    %v2569 = vunpack.c.l.b16 %v2258
    %v2570 = vunpack.c.h.b16 %v2258
    %v2571 = vunpack.c.l.b16 %v2259
    %v2572 = vunpack.c.h.b16 %v2259
    %v2573 = vunpack.c.l.b16 %v2260
    %v2574 = vunpack.c.h.b16 %v2260
    %v2575 = vunpack.c.l.b16 %v2261
    %v2576 = vunpack.c.h.b16 %v2261
    %v2577 = vunpack.c.l.b16 %v2262
    %v2578 = vunpack.c.h.b16 %v2262
    %v2579 = vunpack.c.l.b16 %v2263
    %v2580 = vunpack.c.h.b16 %v2263
    %v2581 = vunpack.c.l.b16 %v2264
    %v2582 = vunpack.c.h.b16 %v2264
    %v2583 = vunpack.c.l.b16 %v2265
    %v2584 = vunpack.c.h.b16 %v2265
    %v2585 = vunpack.c.l.b16 %v2266
    %v2586 = vunpack.c.h.b16 %v2266
    %v2587 = vunpack.c.l.b16 %v2267
    %v2588 = vunpack.c.h.b16 %v2267
    %v2589 = vunpack.c.l.b16 %v2268
    %v2590 = vunpack.c.h.b16 %v2268
    %v2591 = vunpack.c.l.b16 %v2269
    %v2592 = vunpack.c.h.b16 %v2269
    %v2593 = vunpack.c.l.b16 %v2270
    %v2594 = vunpack.c.h.b16 %v2270
    %v2595 = vunpack.c.l.b16 %v2271
    %v2596 = vunpack.c.h.b16 %v2271
    %v2597 = vunpack.c.l.b16 %v2272
    %v2598 = vunpack.c.h.b16 %v2272
    %v2599 = vunpack.c.l.b16 %v2273
    %v2600 = vunpack.c.h.b16 %v2273
    %v2601 = vunpack.c.l.b16 %v2274
    %v2602 = vunpack.c.h.b16 %v2274
    %v2603 = vunpack.c.l.b16 %v2275
    %v2604 = vunpack.c.h.b16 %v2275
    %v2605 = vunpack.c.l.b16 %v2276
    %v2606 = vunpack.c.h.b16 %v2276
    %v2607 = vunpack.c.l.b16 %v2277
    %v2608 = vunpack.c.h.b16 %v2277
    %v2609 = vunpack.c.l.b16 %v2278
    %v2610 = vunpack.c.h.b16 %v2278
    %v2611 = vunpack.c.l.b16 %v2279
    %v2612 = vunpack.c.h.b16 %v2279
    %v2613 = vunpack.c.l.b16 %v2280
    %v2614 = vunpack.c.h.b16 %v2280
    %v2615 = vunpack.c.l.b16 %v2281
    %v2616 = vunpack.c.h.b16 %v2281
    %v2617 = vunpack.c.l.b16 %v2282
    %v2618 = vunpack.c.h.b16 %v2282
    %v2619 = vunpack.c.l.b16 %v2283
    %v2620 = vunpack.c.h.b16 %v2283
    %v2621 = vunpack.c.l.b16 %v2284
    %v2622 = vunpack.c.h.b16 %v2284
    %v2623 = vunpack.c.l.b16 %v2285
    %v2624 = vunpack.c.h.b16 %v2285
    %v2625 = vunpack.c.l.b16 %v2286
    %v2626 = vunpack.c.h.b16 %v2286
    %v2627 = vunpack.c.l.b16 %v2287
    %v2628 = vunpack.c.h.b16 %v2287
    %v2629 = vunpack.c.l.b16 %v2288
    %v2630 = vunpack.c.h.b16 %v2288
    %v2631 = vunpack.c.l.b16 %v2289
    %v2632 = vunpack.c.h.b16 %v2289
    %v2633 = vunpack.c.l.b16 %v2290
    %v2634 = vunpack.c.h.b16 %v2290
    %v2635 = vunpack.c.l.b16 %v2291
    %v2636 = vunpack.c.h.b16 %v2291
    %v2637 = vunpack.c.l.b16 %v2292
    %v2638 = vunpack.c.h.b16 %v2292
    %v2639 = vunpack.c.l.b16 %v2293
    %v2640 = vunpack.c.h.b16 %v2293
    %v2641 = vunpack.c.l.b16 %v2294
    %v2642 = vunpack.c.h.b16 %v2294
    %v2643 = vunpack.c.l.b16 %v2295
    %v2644 = vunpack.c.h.b16 %v2295
    %v2645 = vunpack.c.l.b16 %v2296
    %v2646 = vunpack.c.h.b16 %v2296
    %v2647 = vunpack.c.l.b16 %v2297
    %v2648 = vunpack.c.h.b16 %v2297
    %v2649 = vunpack.c.l.b16 %v2298
    %v2650 = vunpack.c.h.b16 %v2298
    %v2651 = vunpack.c.l.b16 %v2299
    %v2652 = vunpack.c.h.b16 %v2299
    %v2653 = vunpack.c.l.b16 %v2300
    %v2654 = vunpack.c.h.b16 %v2300
    %v2655 = vunpack.c.l.b16 %v2301
    %v2656 = vunpack.c.h.b16 %v2301
    %v2657 = vunpack.c.l.b16 %v2302
    %v2658 = vunpack.c.h.b16 %v2302
    %v2659 = vunpack.c.l.b16 %v2303
    %v2660 = vunpack.c.h.b16 %v2303
    %v2661 = vunpack.c.l.b16 %v2304
    %v2662 = vunpack.c.h.b16 %v2304
    %v2663 = vunpack.c.l.b16 %v2305
    %v2664 = vunpack.c.h.b16 %v2305
    %v2665 = vunpack.c.l.b16 %v2306
    %v2666 = vunpack.c.h.b16 %v2306
    %v2667 = vunpack.c.l.b16 %v2307
    %v2668 = vunpack.c.h.b16 %v2307
    %v2669 = vunpack.c.l.b16 %v2308
    %v2670 = vunpack.c.h.b16 %v2308
    %v2671 = vunpack.c.l.b16 %v2309
    %v2672 = vunpack.c.h.b16 %v2309
    %v2673 = vunpack.c.l.b16 %v2310
    %v2674 = vunpack.c.h.b16 %v2310
    %v2675 = vunpack.c.l.b16 %v2311
    %v2676 = vunpack.c.h.b16 %v2311
    %v2677 = vunpack.c.l.b16 %v2312
    %v2678 = vunpack.c.h.b16 %v2312
    %v2679 = vunpack.c.l.b16 %v2313
    %v2680 = vunpack.c.h.b16 %v2313
    %v2681 = vunpack.c.l.b16 %v2314
    %v2682 = vunpack.c.h.b16 %v2314
    %v2683 = vunpack.c.l.b16 %v2315
    %v2684 = vunpack.c.h.b16 %v2315
    %v2685 = vunpack.c.l.b16 %v2316
    %v2686 = vunpack.c.h.b16 %v2316
    %v2687 = vunpack.c.l.b16 %v2317
    %v2688 = vunpack.c.h.b16 %v2317
    %v2689 = vunpack.c.l.b16 %v2318
    %v2690 = vunpack.c.h.b16 %v2318
    %v2691 = vunpack.c.l.b16 %v2319
    %v2692 = vunpack.c.h.b16 %v2319
    %v2693 = vunpack.c.l.b16 %v2320
    %v2694 = vunpack.c.h.b16 %v2320
    %v2695 = vunpack.c.l.b16 %v2321
    %v2696 = vunpack.c.h.b16 %v2321
    %v2697 = vunpack.c.l.b16 %v2322
    %v2698 = vunpack.c.h.b16 %v2322
    %v2699 = vunpack.c.l.b16 %v2323
    %v2700 = vunpack.c.h.b16 %v2323
    %v2701 = vunpack.c.l.b16 %v2324
    %v2702 = vunpack.c.h.b16 %v2324
    %v2703 = vunpack.c.l.b16 %v2325
    %v2704 = vunpack.c.h.b16 %v2325
    %v2705 = vunpack.c.l.b16 %v2326
    %v2706 = vunpack.c.h.b16 %v2326
    %v2707 = vunpack.c.l.b16 %v2327
    %v2708 = vunpack.c.h.b16 %v2327
    %v2709 = vunpack.c.l.b16 %v2328
    %v2710 = vunpack.c.h.b16 %v2328
    %v2711 = vunpack.c.l.b16 %v2329
    %v2712 = vunpack.c.h.b16 %v2329
    %v2713 = vunpack.c.l.b16 %v2330
    %v2714 = vunpack.c.h.b16 %v2330
    %v2715 = vunpack.c.l.b16 %v2331
    %v2716 = vunpack.c.h.b16 %v2331
    %v2717 = vunpack.c.l.b16 %v2332
    %v2718 = vunpack.c.h.b16 %v2332
    %v2719 = vunpack.c.l.b16 %v2333
    %v2720 = vunpack.c.h.b16 %v2333
    %v2721 = vunpack.c.l.b16 %v2334
    %v2722 = vunpack.c.h.b16 %v2334
    %v2723 = vunpack.c.l.b16 %v2335
    %v2724 = vunpack.c.h.b16 %v2335
    %v2725 = vunpack.c.l.b16 %v2336
    %v2726 = vunpack.c.h.b16 %v2336
    %v2727 = vunpack.c.l.b16 %v2337
    %v2728 = vunpack.c.h.b16 %v2337
    %v2729 = vunpack.c.l.b16 %v2338
    %v2730 = vunpack.c.h.b16 %v2338
    %v2731 = vunpack.c.l.b16 %v2339
    %v2732 = vunpack.c.h.b16 %v2339
    %v2733 = vunpack.c.l.b16 %v2340
    %v2734 = vunpack.c.h.b16 %v2340
    %v2735 = vunpack.c.l.b16 %v2341
    %v2736 = vunpack.c.h.b16 %v2341
    %v2737 = vunpack.c.l.b16 %v2342
    %v2738 = vunpack.c.h.b16 %v2342
    %v2739 = vunpack.c.l.b16 %v2343
    %v2740 = vunpack.c.h.b16 %v2343
    %v2741 = vunpack.c.l.b16 %v2344
    %v2742 = vunpack.c.h.b16 %v2344
    %v2743 = vunpack.c.l.b16 %v2345
    %v2744 = vunpack.c.h.b16 %v2345
    %v2745 = vunpack.c.l.b16 %v2346
    %v2746 = vunpack.c.h.b16 %v2346
    %v2747 = vunpack.c.l.b16 %v2347
    %v2748 = vunpack.c.h.b16 %v2347
    %v2749 = vunpack.c.l.b16 %v2348
    %v2750 = vunpack.c.h.b16 %v2348
    %v2751 = vunpack.c.l.b16 %v2349
    %v2752 = vunpack.c.h.b16 %v2349
    %v2753 = vunpack.c.l.b16 %v2350
    %v2754 = vunpack.c.h.b16 %v2350
    %v2755 = vunpack.c.l.b16 %v2351
    %v2756 = vunpack.c.h.b16 %v2351
    %v2757 = vunpack.c.l.b16 %v2352
    %v2758 = vunpack.c.h.b16 %v2352
    %v2759 = vpack.c.b16 %v2507, %v2503
    %v2760 = vpack.c.b16 %v2508, %v2504
    %v2761 = vpack.c.b16 %v2509, %v2505
    %v2762 = vpack.c.b16 %v2510, %v2506
    %v2763 = vpack.c.b16 %v2515, %v2511
    %v2764 = vpack.c.b16 %v2516, %v2512
    %v2765 = vpack.c.b16 %v2517, %v2513
    %v2766 = vpack.c.b16 %v2518, %v2514
    %v2767 = vpack.c.b16 %v2523, %v2519
    %v2768 = vpack.c.b16 %v2524, %v2520
    %v2769 = vpack.c.b16 %v2525, %v2521
    %v2770 = vpack.c.b16 %v2526, %v2522
    %v2771 = vpack.c.b16 %v2531, %v2527
    %v2772 = vpack.c.b16 %v2532, %v2528
    %v2773 = vpack.c.b16 %v2533, %v2529
    %v2774 = vpack.c.b16 %v2534, %v2530
    %v2775 = vpack.c.b16 %v2539, %v2535
    %v2776 = vpack.c.b16 %v2540, %v2536
    %v2777 = vpack.c.b16 %v2541, %v2537
    %v2778 = vpack.c.b16 %v2542, %v2538
    %v2779 = vpack.c.b16 %v2547, %v2543
    %v2780 = vpack.c.b16 %v2548, %v2544
    %v2781 = vpack.c.b16 %v2549, %v2545
    %v2782 = vpack.c.b16 %v2550, %v2546
    %v2783 = vpack.c.b16 %v2555, %v2551
    %v2784 = vpack.c.b16 %v2556, %v2552
    %v2785 = vpack.c.b16 %v2557, %v2553
    %v2786 = vpack.c.b16 %v2558, %v2554
    %v2787 = vpack.c.b16 %v2563, %v2559
    %v2788 = vpack.c.b16 %v2564, %v2560
    %v2789 = vpack.c.b16 %v2565, %v2561
    %v2790 = vpack.c.b16 %v2566, %v2562
    %v2791 = vpack.c.b16 %v2571, %v2567
    %v2792 = vpack.c.b16 %v2572, %v2568
    %v2793 = vpack.c.b16 %v2573, %v2569
    %v2794 = vpack.c.b16 %v2574, %v2570
    %v2795 = vpack.c.b16 %v2579, %v2575
    %v2796 = vpack.c.b16 %v2580, %v2576
    %v2797 = vpack.c.b16 %v2581, %v2577
    %v2798 = vpack.c.b16 %v2582, %v2578
    %v2799 = vpack.c.b16 %v2587, %v2583
    %v2800 = vpack.c.b16 %v2588, %v2584
    %v2801 = vpack.c.b16 %v2589, %v2585
    %v2802 = vpack.c.b16 %v2590, %v2586
    %v2803 = vpack.c.b16 %v2595, %v2591
    %v2804 = vpack.c.b16 %v2596, %v2592
    %v2805 = vpack.c.b16 %v2597, %v2593
    %v2806 = vpack.c.b16 %v2598, %v2594
    %v2807 = vpack.c.b16 %v2603, %v2599
    %v2808 = vpack.c.b16 %v2604, %v2600
    %v2809 = vpack.c.b16 %v2605, %v2601
    %v2810 = vpack.c.b16 %v2606, %v2602
    %v2811 = vpack.c.b16 %v2611, %v2607
    %v2812 = vpack.c.b16 %v2612, %v2608
    %v2813 = vpack.c.b16 %v2613, %v2609
    %v2814 = vpack.c.b16 %v2614, %v2610
    %v2815 = vpack.c.b16 %v2619, %v2615
    %v2816 = vpack.c.b16 %v2620, %v2616
    %v2817 = vpack.c.b16 %v2621, %v2617
    %v2818 = vpack.c.b16 %v2622, %v2618
    %v2819 = vpack.c.b16 %v2627, %v2623
    %v2820 = vpack.c.b16 %v2628, %v2624
    %v2821 = vpack.c.b16 %v2629, %v2625
    %v2822 = vpack.c.b16 %v2630, %v2626
    %v2823 = vpack.c.b16 %v2635, %v2631
    %v2824 = vpack.c.b16 %v2636, %v2632
    %v2825 = vpack.c.b16 %v2637, %v2633
    %v2826 = vpack.c.b16 %v2638, %v2634
    %v2827 = vpack.c.b16 %v2643, %v2639
    %v2828 = vpack.c.b16 %v2644, %v2640
    %v2829 = vpack.c.b16 %v2645, %v2641
    %v2830 = vpack.c.b16 %v2646, %v2642
    %v2831 = vpack.c.b16 %v2651, %v2647
    %v2832 = vpack.c.b16 %v2652, %v2648
    %v2833 = vpack.c.b16 %v2653, %v2649
    %v2834 = vpack.c.b16 %v2654, %v2650
    %v2835 = vpack.c.b16 %v2659, %v2655
    %v2836 = vpack.c.b16 %v2660, %v2656
    %v2837 = vpack.c.b16 %v2661, %v2657
    %v2838 = vpack.c.b16 %v2662, %v2658
    %v2839 = vpack.c.b16 %v2667, %v2663
    %v2840 = vpack.c.b16 %v2668, %v2664
    %v2841 = vpack.c.b16 %v2669, %v2665
    %v2842 = vpack.c.b16 %v2670, %v2666
    %v2843 = vpack.c.b16 %v2675, %v2671
    %v2844 = vpack.c.b16 %v2676, %v2672
    %v2845 = vpack.c.b16 %v2677, %v2673
    %v2846 = vpack.c.b16 %v2678, %v2674
    %v2847 = vpack.c.b16 %v2683, %v2679
    %v2848 = vpack.c.b16 %v2684, %v2680
    %v2849 = vpack.c.b16 %v2685, %v2681
    %v2850 = vpack.c.b16 %v2686, %v2682
    %v2851 = vpack.c.b16 %v2691, %v2687
    %v2852 = vpack.c.b16 %v2692, %v2688
    %v2853 = vpack.c.b16 %v2693, %v2689
    %v2854 = vpack.c.b16 %v2694, %v2690
    %v2855 = vpack.c.b16 %v2699, %v2695
    %v2856 = vpack.c.b16 %v2700, %v2696
    %v2857 = vpack.c.b16 %v2701, %v2697
    %v2858 = vpack.c.b16 %v2702, %v2698
    %v2859 = vpack.c.b16 %v2707, %v2703
    %v2860 = vpack.c.b16 %v2708, %v2704
    %v2861 = vpack.c.b16 %v2709, %v2705
    %v2862 = vpack.c.b16 %v2710, %v2706
    %v2863 = vpack.c.b16 %v2715, %v2711
    %v2864 = vpack.c.b16 %v2716, %v2712
    %v2865 = vpack.c.b16 %v2717, %v2713
    %v2866 = vpack.c.b16 %v2718, %v2714
    %v2867 = vpack.c.b16 %v2723, %v2719
    %v2868 = vpack.c.b16 %v2724, %v2720
    %v2869 = vpack.c.b16 %v2725, %v2721
    %v2870 = vpack.c.b16 %v2726, %v2722
    %v2871 = vpack.c.b16 %v2731, %v2727
    %v2872 = vpack.c.b16 %v2732, %v2728
    %v2873 = vpack.c.b16 %v2733, %v2729
    %v2874 = vpack.c.b16 %v2734, %v2730
    %v2875 = vpack.c.b16 %v2739, %v2735
    %v2876 = vpack.c.b16 %v2740, %v2736
    %v2877 = vpack.c.b16 %v2741, %v2737
    %v2878 = vpack.c.b16 %v2742, %v2738
    %v2879 = vpack.c.b16 %v2747, %v2743
    %v2880 = vpack.c.b16 %v2748, %v2744
    %v2881 = vpack.c.b16 %v2749, %v2745
    %v2882 = vpack.c.b16 %v2750, %v2746
    %v2883 = vpack.c.b16 %v2755, %v2751
    %v2884 = vpack.c.b16 %v2756, %v2752
    %v2885 = vpack.c.b16 %v2757, %v2753
    %v2886 = vpack.c.b16 %v2758, %v2754
    %3015 = vmatprep.subr.bf16.mxu0 %v2760
    %3016 = vmatpush1.bf16.msra.mxu0 %v2759
    %3017 = vmatprep.subr.bf16.mxu0 %v2764
    %3018 = vmatpush1.bf16.msra.mxu0 %v2763
    %3019 = vmatprep.subr.bf16.mxu0 %v2768
    %3020 = vmatpush1.bf16.msra.mxu0 %v2767
    %3021 = vmatprep.subr.bf16.mxu0 %v2772
    %3022 = vmatpush1.bf16.msra.mxu0 %v2771
    %3023 = vmatprep.subr.bf16.mxu0 %v2776
    %3024 = vmatpush1.bf16.msra.mxu0 %v2775
    %3025 = vmatprep.subr.bf16.mxu0 %v2780
    %3026 = vmatpush1.bf16.msra.mxu0 %v2779
    %3027 = vmatprep.subr.bf16.mxu0 %v2784
    %3028 = vmatpush1.bf16.msra.mxu0 %v2783
    %3029 = vmatprep.subr.bf16.mxu0 %v2788
    %3030 = vmatpush1.bf16.msra.mxu0 %v2787
    %3031 = vmatprep.subr.bf16.mxu0 %v2792
    %3032 = vmatpush1.bf16.msra.mxu0 %v2791
    %3033 = vmatprep.subr.bf16.mxu0 %v2796
    %3034 = vmatpush1.bf16.msra.mxu0 %v2795
    %3035 = vmatprep.subr.bf16.mxu0 %v2800
    %3036 = vmatpush1.bf16.msra.mxu0 %v2799
    %3037 = vmatprep.subr.bf16.mxu0 %v2804
    %3038 = vmatpush1.bf16.msra.mxu0 %v2803
    %3039 = vmatprep.subr.bf16.mxu0 %v2808
    %3040 = vmatpush1.bf16.msra.mxu0 %v2807
    %3041 = vmatprep.subr.bf16.mxu0 %v2812
    %3042 = vmatpush1.bf16.msra.mxu0 %v2811
    %3043 = vmatprep.subr.bf16.mxu0 %v2816
    %3044 = vmatpush1.bf16.msra.mxu0 %v2815
    %3045 = vmatprep.subr.bf16.mxu0 %v2820
    %3046 = vmatpush1.bf16.msra.mxu0 %v2819
    %3047 = vmatprep.mubr.bf16.mxu0 %v2222
    %3048 = vmatmul.mubr.bf16.gmra.mrb[0].mxu0 %v2221
    %v3049 = vpop.f32.mrb[0].mxu0
    %v3050 = vadd.f32 %v2358, %v3049
    %v3051 = vpop.f32.mrb[0].mxu0
    %v3052 = vadd.f32 %v2362, %v3051
    %v3053 = vpop.f32.mrb[0].mxu0
    %v3054 = vadd.f32 %v2358, %v3053
    %v3055 = vpop.f32.mrb[0].mxu0
    %v3056 = vadd.f32 %v2362, %v3055
    %3057 = vdwg.mxu0
    %3058 = vmatprep.subr.bf16.mxu0 %v2824
    %3059 = vmatpush1.bf16.msra.mxu0 %v2823
    %3060 = vmatprep.subr.bf16.mxu0 %v2828
    %3061 = vmatpush1.bf16.msra.mxu0 %v2827
    %3062 = vmatprep.subr.bf16.mxu0 %v2832
    %3063 = vmatpush1.bf16.msra.mxu0 %v2831
    %3064 = vmatprep.subr.bf16.mxu0 %v2836
    %3065 = vmatpush1.bf16.msra.mxu0 %v2835
    %3066 = vmatprep.subr.bf16.mxu0 %v2840
    %3067 = vmatpush1.bf16.msra.mxu0 %v2839
    %3068 = vmatprep.subr.bf16.mxu0 %v2844
    %3069 = vmatpush1.bf16.msra.mxu0 %v2843
    %3070 = vmatprep.subr.bf16.mxu0 %v2848
    %3071 = vmatpush1.bf16.msra.mxu0 %v2847
    %3072 = vmatprep.subr.bf16.mxu0 %v2852
    %3073 = vmatpush1.bf16.msra.mxu0 %v2851
    %3074 = vmatprep.subr.bf16.mxu0 %v2856
    %3075 = vmatpush1.bf16.msra.mxu0 %v2855
    %3076 = vmatprep.subr.bf16.mxu0 %v2860
    %3077 = vmatpush1.bf16.msra.mxu0 %v2859
    %3078 = vmatprep.subr.bf16.mxu0 %v2864
    %3079 = vmatpush1.bf16.msra.mxu0 %v2863
    %3080 = vmatprep.subr.bf16.mxu0 %v2868
    %3081 = vmatpush1.bf16.msra.mxu0 %v2867
    %3082 = vmatprep.subr.bf16.mxu0 %v2872
    %3083 = vmatpush1.bf16.msra.mxu0 %v2871
    %3084 = vmatprep.subr.bf16.mxu0 %v2876
    %3085 = vmatpush1.bf16.msra.mxu0 %v2875
    %3086 = vmatprep.subr.bf16.mxu0 %v2880
    %3087 = vmatpush1.bf16.msra.mxu0 %v2879
    %3088 = vmatprep.subr.bf16.mxu0 %v2884
    %3089 = vmatpush1.bf16.msra.mxu0 %v2883
    %3090 = vmatprep.mubr.bf16.mxu0 %v2224
    %3091 = vmatmul.mubr.bf16.gmra.mrb[0].mxu0 %v2223
    %v3092 = vpop.f32.mrb[0].mxu0
    %v3093 = vadd.f32 %v3050, %v3092
    %v3094 = vpop.f32.mrb[0].mxu0
    %v3095 = vadd.f32 %v3052, %v3094
    %v3096 = vpop.f32.mrb[0].mxu0
    %v3097 = vadd.f32 %v3054, %v3096
    %v3098 = vpop.f32.mrb[0].mxu0
    %v3099 = vadd.f32 %v3056, %v3098
    %3100 = vdwg.mxu0
    %3101 = vmatprep.subr.bf16.mxu0 %v2762
    %3102 = vmatpush1.bf16.msra.mxu0 %v2761
    %3103 = vmatprep.subr.bf16.mxu0 %v2766
    %3104 = vmatpush1.bf16.msra.mxu0 %v2765
    %3105 = vmatprep.subr.bf16.mxu0 %v2770
    %3106 = vmatpush1.bf16.msra.mxu0 %v2769
    %3107 = vmatprep.subr.bf16.mxu0 %v2774
    %3108 = vmatpush1.bf16.msra.mxu0 %v2773
    %3109 = vmatprep.subr.bf16.mxu0 %v2778
    %3110 = vmatpush1.bf16.msra.mxu0 %v2777
    %3111 = vmatprep.subr.bf16.mxu0 %v2782
    %3112 = vmatpush1.bf16.msra.mxu0 %v2781
    %3113 = vmatprep.subr.bf16.mxu0 %v2786
    %3114 = vmatpush1.bf16.msra.mxu0 %v2785
    %3115 = vmatprep.subr.bf16.mxu0 %v2790
    %3116 = vmatpush1.bf16.msra.mxu0 %v2789
    %3117 = vmatprep.subr.bf16.mxu0 %v2794
    %3118 = vmatpush1.bf16.msra.mxu0 %v2793
    %3119 = vmatprep.subr.bf16.mxu0 %v2798
    %3120 = vmatpush1.bf16.msra.mxu0 %v2797
    %3121 = vmatprep.subr.bf16.mxu0 %v2802
    %3122 = vmatpush1.bf16.msra.mxu0 %v2801
    %3123 = vmatprep.subr.bf16.mxu0 %v2806
    %3124 = vmatpush1.bf16.msra.mxu0 %v2805
    %3125 = vmatprep.subr.bf16.mxu0 %v2810
    %3126 = vmatpush1.bf16.msra.mxu0 %v2809
    %3127 = vmatprep.subr.bf16.mxu0 %v2814
    %3128 = vmatpush1.bf16.msra.mxu0 %v2813
    %3129 = vmatprep.subr.bf16.mxu0 %v2818
    %3130 = vmatpush1.bf16.msra.mxu0 %v2817
    %3131 = vmatprep.subr.bf16.mxu0 %v2822
    %3132 = vmatpush1.bf16.msra.mxu0 %v2821
    %3133 = vmatprep.mubr.bf16.mxu0 %v2222
    %3134 = vmatmul.mubr.bf16.gmra.mrb[0].mxu0 %v2221
    %v3135 = vpop.f32.mrb[0].mxu0
    %v3136 = vadd.f32 %v2366, %v3135
    %v3137 = vpop.f32.mrb[0].mxu0
    %v3138 = vadd.f32 %v2370, %v3137
    %v3139 = vpop.f32.mrb[0].mxu0
    %v3140 = vadd.f32 %v2366, %v3139
    %v3141 = vpop.f32.mrb[0].mxu0
    %v3142 = vadd.f32 %v2370, %v3141
    %3143 = vdwg.mxu0
    %3144 = vmatprep.subr.bf16.mxu0 %v2826
    %3145 = vmatpush1.bf16.msra.mxu0 %v2825
    %3146 = vmatprep.subr.bf16.mxu0 %v2830
    %3147 = vmatpush1.bf16.msra.mxu0 %v2829
    %3148 = vmatprep.subr.bf16.mxu0 %v2834
    %3149 = vmatpush1.bf16.msra.mxu0 %v2833
    %3150 = vmatprep.subr.bf16.mxu0 %v2838
    %3151 = vmatpush1.bf16.msra.mxu0 %v2837
    %3152 = vmatprep.subr.bf16.mxu0 %v2842
    %3153 = vmatpush1.bf16.msra.mxu0 %v2841
    %3154 = vmatprep.subr.bf16.mxu0 %v2846
    %3155 = vmatpush1.bf16.msra.mxu0 %v2845
    %3156 = vmatprep.subr.bf16.mxu0 %v2850
    %3157 = vmatpush1.bf16.msra.mxu0 %v2849
    %3158 = vmatprep.subr.bf16.mxu0 %v2854
    %3159 = vmatpush1.bf16.msra.mxu0 %v2853
    %3160 = vmatprep.subr.bf16.mxu0 %v2858
    %3161 = vmatpush1.bf16.msra.mxu0 %v2857
    %3162 = vmatprep.subr.bf16.mxu0 %v2862
    %3163 = vmatpush1.bf16.msra.mxu0 %v2861
    %3164 = vmatprep.subr.bf16.mxu0 %v2866
    %3165 = vmatpush1.bf16.msra.mxu0 %v2865
    %3166 = vmatprep.subr.bf16.mxu0 %v2870
    %3167 = vmatpush1.bf16.msra.mxu0 %v2869
    %3168 = vmatprep.subr.bf16.mxu0 %v2874
    %3169 = vmatpush1.bf16.msra.mxu0 %v2873
    %3170 = vmatprep.subr.bf16.mxu0 %v2878
    %3171 = vmatpush1.bf16.msra.mxu0 %v2877
    %3172 = vmatprep.subr.bf16.mxu0 %v2882
    %3173 = vmatpush1.bf16.msra.mxu0 %v2881
    %3174 = vmatprep.subr.bf16.mxu0 %v2886
    %3175 = vmatpush1.bf16.msra.mxu0 %v2885
    %3176 = vmatprep.mubr.bf16.mxu0 %v2224
    %3177 = vmatmul.mubr.bf16.gmra.mrb[0].mxu0 %v2223
    %v3178 = vpop.f32.mrb[0].mxu0
    %v3179 = vadd.f32 %v3136, %v3178
    %v3180 = vpop.f32.mrb[0].mxu0
    %v3181 = vadd.f32 %v3138, %v3180
    %v3182 = vpop.f32.mrb[0].mxu0
    %v3183 = vadd.f32 %v3140, %v3182
    %v3184 = vpop.f32.mrb[0].mxu0
    %v3185 = vadd.f32 %v3142, %v3184
    %3186 = vdwg.mxu0
    %v3187 = vmax.f32 %v3093, 0.0
    %v3188 = vmax.f32 %v3095, 0.0
    %v3189 = vmax.f32 %v3179, 0.0
    %v3190 = vmax.f32 %v3181, 0.0
    %v3191 = vmax.f32 %v3097, 0.0
    %v3192 = vmax.f32 %v3099, 0.0
    %v3193 = vmax.f32 %v3183, 0.0
    %v3194 = vmax.f32 %v3185, 0.0
    %v3195 = vpack.c.bf16 %v3191, %v3187
    %v3196 = vpack.c.bf16 %v3192, %v3188
    %v3197 = vpack.c.bf16 %v3193, %v3189
    %v3198 = vpack.c.bf16 %v3194, %v3190
    %v3199 = vld [vmem:[#allocation11] sm:$0xf]
    %v3200 = vld [vmem:[#allocation11 + $0x4] sm:$0xf]
    %v3201 = vld [vmem:[#allocation11 + $0x8] sm:$0xf]
    %v3202 = vld [vmem:[#allocation11 + $0xc] sm:$0xf]
    %v3203 = vld [vmem:[#allocation11 + $0x10] sm:$0xf]
    %v3204 = vld [vmem:[#allocation11 + $0x14] sm:$0xf]
    %v3205 = vld [vmem:[#allocation11 + $0x18] sm:$0xf]
    %v3206 = vld [vmem:[#allocation11 + $0x1c] sm:$0xf]
    %v3207 = vld [vmem:[#allocation11 + $0x20] sm:$0xf]
    %v3208 = vld [vmem:[#allocation11 + $0x24] sm:$0xf]
    %v3209 = vld [vmem:[#allocation11 + $0x28] sm:$0xf]
    %v3210 = vld [vmem:[#allocation11 + $0x2c] sm:$0xf]
    %v3211 = vld [vmem:[#allocation11 + $0x30] sm:$0xf]
    %v3212 = vld [vmem:[#allocation11 + $0x34] sm:$0xf]
    %v3213 = vld [vmem:[#allocation11 + $0x38] sm:$0xf]
    %v3214 = vld [vmem:[#allocation11 + $0x3c] sm:$0xf]
    %v3215 = vld [vmem:[#allocation11 + $0x40] sm:$0xf]
    %v3216 = vld [vmem:[#allocation11 + $0x44] sm:$0xf]
    %v3217 = vld [vmem:[#allocation11 + $0x48] sm:$0xf]
    %v3218 = vld [vmem:[#allocation11 + $0x4c] sm:$0xf]
    %v3219 = vld [vmem:[#allocation11 + $0x50] sm:$0xf]
    %v3220 = vld [vmem:[#allocation11 + $0x54] sm:$0xf]
    %v3221 = vld [vmem:[#allocation11 + $0x58] sm:$0xf]
    %v3222 = vld [vmem:[#allocation11 + $0x5c] sm:$0xf]
    %v3223 = vld [vmem:[#allocation11 + $0x60] sm:$0xf]
    %v3224 = vld [vmem:[#allocation11 + $0x64] sm:$0xf]
    %v3225 = vld [vmem:[#allocation11 + $0x68] sm:$0xf]
    %v3226 = vld [vmem:[#allocation11 + $0x6c] sm:$0xf]
    %v3227 = vld [vmem:[#allocation11 + $0x70] sm:$0xf]
    %v3228 = vld [vmem:[#allocation11 + $0x74] sm:$0xf]
    %v3229 = vld [vmem:[#allocation11 + $0x78] sm:$0xf]
    %v3230 = vld [vmem:[#allocation11 + $0x7c] sm:$0xf]
    %v3231 = vld [vmem:[#allocation11 + $0x80] sm:$0xf]
    %v3232 = vld [vmem:[#allocation11 + $0x84] sm:$0xf]
    %v3233 = vld [vmem:[#allocation11 + $0x88] sm:$0xf]
    %v3234 = vld [vmem:[#allocation11 + $0x8c] sm:$0xf]
    %v3235 = vld [vmem:[#allocation11 + $0x90] sm:$0xf]
    %v3236 = vld [vmem:[#allocation11 + $0x94] sm:$0xf]
    %v3237 = vld [vmem:[#allocation11 + $0x98] sm:$0xf]
    %v3238 = vld [vmem:[#allocation11 + $0x9c] sm:$0xf]
    %v3239 = vld [vmem:[#allocation11 + $0xa0] sm:$0xf]
    %v3240 = vld [vmem:[#allocation11 + $0xa4] sm:$0xf]
    %v3241 = vld [vmem:[#allocation11 + $0xa8] sm:$0xf]
    %v3242 = vld [vmem:[#allocation11 + $0xac] sm:$0xf]
    %v3243 = vld [vmem:[#allocation11 + $0xb0] sm:$0xf]
    %v3244 = vld [vmem:[#allocation11 + $0xb4] sm:$0xf]
    %v3245 = vld [vmem:[#allocation11 + $0xb8] sm:$0xf]
    %v3246 = vld [vmem:[#allocation11 + $0xbc] sm:$0xf]
    %v3247 = vld [vmem:[#allocation11 + $0xc0] sm:$0xf]
    %v3248 = vld [vmem:[#allocation11 + $0xc4] sm:$0xf]
    %v3249 = vld [vmem:[#allocation11 + $0xc8] sm:$0xf]
    %v3250 = vld [vmem:[#allocation11 + $0xcc] sm:$0xf]
    %v3251 = vld [vmem:[#allocation11 + $0xd0] sm:$0xf]
    %v3252 = vld [vmem:[#allocation11 + $0xd4] sm:$0xf]
    %v3253 = vld [vmem:[#allocation11 + $0xd8] sm:$0xf]
    %v3254 = vld [vmem:[#allocation11 + $0xdc] sm:$0xf]
    %v3255 = vld [vmem:[#allocation11 + $0xe0] sm:$0xf]
    %v3256 = vld [vmem:[#allocation11 + $0xe4] sm:$0xf]
    %v3257 = vld [vmem:[#allocation11 + $0xe8] sm:$0xf]
    %v3258 = vld [vmem:[#allocation11 + $0xec] sm:$0xf]
    %v3259 = vld [vmem:[#allocation11 + $0xf0] sm:$0xf]
    %v3260 = vld [vmem:[#allocation11 + $0xf4] sm:$0xf]
    %v3261 = vld [vmem:[#allocation11 + $0xf8] sm:$0xf]
    %v3262 = vld [vmem:[#allocation11 + $0xfc] sm:$0xf]
    %v3263 = vld [vmem:[%s10] sm:$0x1]
    %v3265 = vlaneseq
    %v3266 = vshrl.u32 %v3265, 7
    %v3267 = vsub.s32 0, %v3266
    %v3268 = vrot.slane %v3263, %v3267
    %v3334 = vunpack.c.l.b16 %v3199
    %v3335 = vunpack.c.l.b16 %v3200
    %v3336 = vunpack.c.l.b16 %v3201
    %v3337 = vunpack.c.l.b16 %v3202
    %v3338 = vunpack.c.l.b16 %v3203
    %v3339 = vunpack.c.l.b16 %v3204
    %v3340 = vunpack.c.l.b16 %v3205
    %v3341 = vunpack.c.l.b16 %v3206
    %v3342 = vunpack.c.l.b16 %v3207
    %v3343 = vunpack.c.l.b16 %v3208
    %v3344 = vunpack.c.l.b16 %v3209
    %v3345 = vunpack.c.l.b16 %v3210
    %v3346 = vunpack.c.l.b16 %v3211
    %v3347 = vunpack.c.l.b16 %v3212
    %v3348 = vunpack.c.l.b16 %v3213
    %v3349 = vunpack.c.l.b16 %v3214
    %v3350 = vunpack.c.l.b16 %v3215
    %v3351 = vunpack.c.l.b16 %v3216
    %v3352 = vunpack.c.l.b16 %v3217
    %v3353 = vunpack.c.l.b16 %v3218
    %v3354 = vunpack.c.l.b16 %v3219
    %v3355 = vunpack.c.l.b16 %v3220
    %v3356 = vunpack.c.l.b16 %v3221
    %v3357 = vunpack.c.l.b16 %v3222
    %v3358 = vunpack.c.l.b16 %v3223
    %v3359 = vunpack.c.l.b16 %v3224
    %v3360 = vunpack.c.l.b16 %v3225
    %v3361 = vunpack.c.l.b16 %v3226
    %v3362 = vunpack.c.l.b16 %v3227
    %v3363 = vunpack.c.l.b16 %v3228
    %v3364 = vunpack.c.l.b16 %v3229
    %v3365 = vunpack.c.l.b16 %v3230
    %v3366 = vunpack.c.l.b16 %v3231
    %v3367 = vunpack.c.l.b16 %v3232
    %v3368 = vunpack.c.l.b16 %v3233
    %v3369 = vunpack.c.l.b16 %v3234
    %v3370 = vunpack.c.l.b16 %v3235
    %v3371 = vunpack.c.l.b16 %v3236
    %v3372 = vunpack.c.l.b16 %v3237
    %v3373 = vunpack.c.l.b16 %v3238
    %v3374 = vunpack.c.l.b16 %v3239
    %v3375 = vunpack.c.l.b16 %v3240
    %v3376 = vunpack.c.l.b16 %v3241
    %v3377 = vunpack.c.l.b16 %v3242
    %v3378 = vunpack.c.l.b16 %v3243
    %v3379 = vunpack.c.l.b16 %v3244
    %v3380 = vunpack.c.l.b16 %v3245
    %v3381 = vunpack.c.l.b16 %v3246
    %v3382 = vunpack.c.l.b16 %v3247
    %v3383 = vunpack.c.l.b16 %v3248
    %v3384 = vunpack.c.l.b16 %v3249
    %v3385 = vunpack.c.l.b16 %v3250
    %v3386 = vunpack.c.l.b16 %v3251
    %v3387 = vunpack.c.l.b16 %v3252
    %v3388 = vunpack.c.l.b16 %v3253
    %v3389 = vunpack.c.l.b16 %v3254
    %v3390 = vunpack.c.l.b16 %v3255
    %v3391 = vunpack.c.l.b16 %v3256
    %v3392 = vunpack.c.l.b16 %v3257
    %v3393 = vunpack.c.l.b16 %v3258
    %v3394 = vunpack.c.l.b16 %v3259
    %v3395 = vunpack.c.l.b16 %v3260
    %v3396 = vunpack.c.l.b16 %v3261
    %v3397 = vunpack.c.l.b16 %v3262
    %v3398 = vpack.c.b16 %v3335, %v3334
    %v3399 = vpack.c.b16 %v3337, %v3336
    %v3400 = vpack.c.b16 %v3339, %v3338
    %v3401 = vpack.c.b16 %v3341, %v3340
    %v3402 = vpack.c.b16 %v3343, %v3342
    %v3403 = vpack.c.b16 %v3345, %v3344
    %v3404 = vpack.c.b16 %v3347, %v3346
    %v3405 = vpack.c.b16 %v3349, %v3348
    %v3406 = vpack.c.b16 %v3351, %v3350
    %v3407 = vpack.c.b16 %v3353, %v3352
    %v3408 = vpack.c.b16 %v3355, %v3354
    %v3409 = vpack.c.b16 %v3357, %v3356
    %v3410 = vpack.c.b16 %v3359, %v3358
    %v3411 = vpack.c.b16 %v3361, %v3360
    %v3412 = vpack.c.b16 %v3363, %v3362
    %v3413 = vpack.c.b16 %v3365, %v3364
    %v3414 = vpack.c.b16 %v3367, %v3366
    %v3415 = vpack.c.b16 %v3369, %v3368
    %v3416 = vpack.c.b16 %v3371, %v3370
    %v3417 = vpack.c.b16 %v3373, %v3372
    %v3418 = vpack.c.b16 %v3375, %v3374
    %v3419 = vpack.c.b16 %v3377, %v3376
    %v3420 = vpack.c.b16 %v3379, %v3378
    %v3421 = vpack.c.b16 %v3381, %v3380
    %v3422 = vpack.c.b16 %v3383, %v3382
    %v3423 = vpack.c.b16 %v3385, %v3384
    %v3424 = vpack.c.b16 %v3387, %v3386
    %v3425 = vpack.c.b16 %v3389, %v3388
    %v3426 = vpack.c.b16 %v3391, %v3390
    %v3427 = vpack.c.b16 %v3393, %v3392
    %v3428 = vpack.c.b16 %v3395, %v3394
    %v3429 = vpack.c.b16 %v3397, %v3396
    %3462 = vmatprep.subr.bf16.mxu0 0
    %3463 = vmatpush1.bf16.msra.mxu0 %v3398
    %3464 = vmatprep.subr.bf16.mxu0 0
    %3465 = vmatpush1.bf16.msra.mxu0 %v3399
    %3466 = vmatprep.subr.bf16.mxu0 0
    %3467 = vmatpush1.bf16.msra.mxu0 %v3400
    %3468 = vmatprep.subr.bf16.mxu0 0
    %3469 = vmatpush1.bf16.msra.mxu0 %v3401
    %3470 = vmatprep.subr.bf16.mxu0 0
    %3471 = vmatpush1.bf16.msra.mxu0 %v3402
    %3472 = vmatprep.subr.bf16.mxu0 0
    %3473 = vmatpush1.bf16.msra.mxu0 %v3403
    %3474 = vmatprep.subr.bf16.mxu0 0
    %3475 = vmatpush1.bf16.msra.mxu0 %v3404
    %3476 = vmatprep.subr.bf16.mxu0 0
    %3477 = vmatpush1.bf16.msra.mxu0 %v3405
    %3478 = vmatprep.subr.bf16.mxu0 0
    %3479 = vmatpush1.bf16.msra.mxu0 %v3406
    %3480 = vmatprep.subr.bf16.mxu0 0
    %3481 = vmatpush1.bf16.msra.mxu0 %v3407
    %3482 = vmatprep.subr.bf16.mxu0 0
    %3483 = vmatpush1.bf16.msra.mxu0 %v3408
    %3484 = vmatprep.subr.bf16.mxu0 0
    %3485 = vmatpush1.bf16.msra.mxu0 %v3409
    %3486 = vmatprep.subr.bf16.mxu0 0
    %3487 = vmatpush1.bf16.msra.mxu0 %v3410
    %3488 = vmatprep.subr.bf16.mxu0 0
    %3489 = vmatpush1.bf16.msra.mxu0 %v3411
    %3490 = vmatprep.subr.bf16.mxu0 0
    %3491 = vmatpush1.bf16.msra.mxu0 %v3412
    %3492 = vmatprep.subr.bf16.mxu0 0
    %3493 = vmatpush1.bf16.msra.mxu0 %v3413
    %3494 = vmatprep.mubr.bf16.mxu0 %v3196
    %3495 = vmatmul.mubr.bf16.gmra.mrb[0].mxu0 %v3195
    %v3496 = vpop.f32.mrb[0].mxu0
    %v3497 = vadd.f32 %v3268, %v3496
    %v3498 = vpop.f32.mrb[0].mxu0
    %v3499 = vpop.f32.mrb[0].mxu0
    %v3500 = vadd.f32 %v3268, %v3499
    %v3501 = vpop.f32.mrb[0].mxu0
    %3502 = vdwg.mxu0
    %3503 = vmatprep.subr.bf16.mxu0 0
    %3504 = vmatpush1.bf16.msra.mxu0 %v3414
    %3505 = vmatprep.subr.bf16.mxu0 0
    %3506 = vmatpush1.bf16.msra.mxu0 %v3415
    %3507 = vmatprep.subr.bf16.mxu0 0
    %3508 = vmatpush1.bf16.msra.mxu0 %v3416
    %3509 = vmatprep.subr.bf16.mxu0 0
    %3510 = vmatpush1.bf16.msra.mxu0 %v3417
    %3511 = vmatprep.subr.bf16.mxu0 0
    %3512 = vmatpush1.bf16.msra.mxu0 %v3418
    %3513 = vmatprep.subr.bf16.mxu0 0
    %3514 = vmatpush1.bf16.msra.mxu0 %v3419
    %3515 = vmatprep.subr.bf16.mxu0 0
    %3516 = vmatpush1.bf16.msra.mxu0 %v3420
    %3517 = vmatprep.subr.bf16.mxu0 0
    %3518 = vmatpush1.bf16.msra.mxu0 %v3421
    %3519 = vmatprep.subr.bf16.mxu0 0
    %3520 = vmatpush1.bf16.msra.mxu0 %v3422
    %3521 = vmatprep.subr.bf16.mxu0 0
    %3522 = vmatpush1.bf16.msra.mxu0 %v3423
    %3523 = vmatprep.subr.bf16.mxu0 0
    %3524 = vmatpush1.bf16.msra.mxu0 %v3424
    %3525 = vmatprep.subr.bf16.mxu0 0
    %3526 = vmatpush1.bf16.msra.mxu0 %v3425
    %3527 = vmatprep.subr.bf16.mxu0 0
    %3528 = vmatpush1.bf16.msra.mxu0 %v3426
    %3529 = vmatprep.subr.bf16.mxu0 0
    %3530 = vmatpush1.bf16.msra.mxu0 %v3427
    %3531 = vmatprep.subr.bf16.mxu0 0
    %3532 = vmatpush1.bf16.msra.mxu0 %v3428
    %3533 = vmatprep.subr.bf16.mxu0 0
    %3534 = vmatpush1.bf16.msra.mxu0 %v3429
    %3535 = vmatprep.mubr.bf16.mxu0 %v3198
    %3536 = vmatmul.mubr.bf16.gmra.mrb[0].mxu0 %v3197
    %v3537 = vpop.f32.mrb[0].mxu0
    %v3538 = vadd.f32 %v3497, %v3537
    %v3539 = vpop.f32.mrb[0].mxu0
    %v3540 = vpop.f32.mrb[0].mxu0
    %v3541 = vadd.f32 %v3500, %v3540
    %v3542 = vpop.f32.mrb[0].mxu0
    %3543 = vdwg.mxu0
    %3544 = vst [vmem:[#allocation13] sm:$0xff] %v3538
    %3545 = vst [vmem:[#allocation13 + $0x8] sm:$0xff] %v3541
    // Predicated region
    $region70: #{tpu_custom_call.1} parent=1 // pred_check
      _
    $region71: #{tpu_custom_call.1} parent=1 // pred_check_branch
      %3547 = sbr.rel (0) target = $region73
    $region72: #{tpu_custom_call.1} parent=1 // pred_region
      %s3549 = ssub.s32 256, 256
      %3550 = vsyncadd [#allocation4], %s3549
      %s3551 = sshll.u32 [#allocation13], 4
      %s3552 = int_to_ptr.vmem [resolvable:$true] %s3551
      %3557 = dma.vmem_to_hbm [thread:$0]  %s3552, 256, %s11, [#allocation4], 128, 128, 8
    $region73: #{tpu_custom_call.1} parent=1 // pred_fallthru
      _
    // Predicated region
    $region74: #{tpu_custom_call.1} parent=1 // pred_check
      _
    $region75: #{tpu_custom_call.1} parent=1 // pred_check_branch
      %3559 = sbr.rel (0) target = $region77
    $region76: #{tpu_custom_call.1} parent=1 // pred_region
      %3560 = dma.done [#allocation4], 256
    $region77: #{tpu_custom_call.1} parent=1 // pred_fallthru
      _
    %3561 = vsyncpa [#allocation3], 1
    %3562 = vsyncpa [#allocation6], 1
    %3563 = vsyncpa [#allocation9], 1
    %3564 = vsyncpa [#allocation12], 1
    %3565 = vsyncpa [#allocation4], 1

</llo_original>
